<compile_context>
chip_gen: v6e
topology: v6e:2x2x1
jax: 0.10.0
libtpu: 0.0.40
codegen_flags: <defaults>
</compile_context>

<pallas_src>
import functools
import math

import jax
import jax.numpy as jnp
from jax.experimental import pallas as pl
from jax.experimental.pallas import tpu as pltpu


# ----------------------------------------------------------------------------
# Pallas kernel: single invocation, whole sequence resident in VMEM.
# x is passed time-major, batch-padded & flattened: (T*B, IN). y is (T*B, OUT).
# ----------------------------------------------------------------------------
def _rnn_kernel(x_ref, h0_ref, c0_ref,
                w_x_ref, b_x_ref,
                w_ih0_ref, w_hh0_ref, b0_ref,
                w_l1_ref, b1_ref,
                w_out_ref, b_out_ref,
                y_ref, hN_ref, cN_ref,
                rnn_out_ref,
                *, T: int, B: int, M: int, OUT: int, last_tanh: bool):
    x = x_ref[...].astype(jnp.float32)                        # (T*B, IN)

    # ---- Phase 1: hoisted, fused x-projections over the whole (T*B) slab ----
    # columns [0:M]     -> fc_in  (leaky_relu'd LSTM input feature)
    # columns [M:M+OUT] -> fc_res (tanh'd residual branch)
    xp = jnp.dot(x, w_x_ref[...], preferred_element_type=jnp.float32) + b_x_ref[...]
    feat = xp[:, :M]
    feat = jnp.where(feat > 0, feat, 0.01 * feat)             # leaky_relu(0.01)
    res = jnp.tanh(xp[:, M:M + OUT])                          # (T*B, OUT)

    # layer-0 input->gate contribution for every timestep, layer-0 bias folded in
    xg0 = jnp.dot(feat, w_ih0_ref[...], preferred_element_type=jnp.float32) + b0_ref[...]

    # Hoist resident weights / bias broadcast out of the recurrence.
    w_hh0 = w_hh0_ref[...]
    w_l1 = w_l1_ref[...]                                      # (2M, 4M) = [w_ih1 ; w_hh1]
    b1 = jnp.broadcast_to(b1_ref[...], (B, 4 * M))

    def lstm_gates(gates, c_prev):
        # gates: (B, 4M), PyTorch gate order [i | f | g | o].
        # Two full-width transcendental passes (EUP), then static lane slices.
        sig = jax.nn.sigmoid(gates)
        th = jnp.tanh(gates)
        i = sig[:, 0 * M:1 * M]
        f = sig[:, 1 * M:2 * M]
        g = th[:, 2 * M:3 * M]
        o = sig[:, 3 * M:4 * M]
        c_new = f * c_prev + i * g
        h_new = o * jnp.tanh(c_new)
        return h_new, c_new

    # Initial state read directly (full-sublane, batch already padded to 8).
    h_l0 = h0_ref[0].astype(jnp.float32)
    c_l0 = c0_ref[0].astype(jnp.float32)
    h_l1 = h0_ref[1].astype(jnp.float32)
    c_l1 = c0_ref[1].astype(jnp.float32)

    # ---- Phase 2: recurrence (fully unrolled static time loop, T is small) ----
    for t in range(T):
        g0 = xg0[t * B:(t + 1) * B, :] + jnp.dot(
            h_l0, w_hh0, preferred_element_type=jnp.float32)
        h_l0, c_l0 = lstm_gates(g0, c_l0)

        # layer 1: one fused (B,2M)@(2M,4M) matmul instead of two.
        h_cat = jnp.concatenate([h_l0, h_l1], axis=1)
        g1 = jnp.dot(h_cat, w_l1, preferred_element_type=jnp.float32) + b1
        h_l1, c_l1 = lstm_gates(g1, c_l1)

        # Stream h_l1 into VMEM scratch (static offsets; lands on idle vst slot).
        rnn_out_ref[t * B:(t + 1) * B, :] = h_l1

    # ---- Phase 3: hoisted residual-add + output projection over the whole slab ----
    rnn_out = rnn_out_ref[...]                                # (T*B, M)
    y = jnp.dot(res + rnn_out, w_out_ref[...],
                preferred_element_type=jnp.float32) + b_out_ref[...]
    if last_tanh:
        y = jnp.tanh(y)
    y_ref[...] = y.astype(y_ref.dtype)

    hN_ref[0] = h_l0.astype(hN_ref.dtype)
    hN_ref[1] = h_l1.astype(hN_ref.dtype)
    cN_ref[0] = c_l0.astype(cN_ref.dtype)
    cN_ref[1] = c_l1.astype(cN_ref.dtype)


# ----------------------------------------------------------------------------
# Wrapper (PyTorch batch_first convention on the outside)
# ----------------------------------------------------------------------------
def rnn_model_forward(x_btd, h0, c0, params, *, last_tanh=True):
    """x_btd: (B, T, IN) batch_first, h0/c0: (2, B, M). Returns (y (B,T,OUT), (hN, cN))."""
    B, T, IN = x_btd.shape
    M = params["w_in"].shape[1]
    OUT = params["w_out"].shape[1]
    # The module's residual add requires out_dim == memory_dim.
    assert OUT == M, "RnnModel forward requires out_dim == memory_dim"

    # Pad batch to a full 8-sublane multiple so every per-step (B, .) operand
    # is unmasked; MXU cost is unchanged (it pads internally anyway).
    B_pad = max(8, ((B + 7) // 8) * 8)

    # time-major, batch-padded, flattened to a lane-friendly single slab
    x_tm = jnp.transpose(x_btd, (1, 0, 2)).astype(jnp.float32)        # (T, B, IN)
    x_tm = jnp.pad(x_tm, ((0, 0), (0, B_pad - B), (0, 0)))
    x_flat = x_tm.reshape(T * B_pad, IN)

    h0p = jnp.pad(h0.astype(jnp.float32), ((0, 0), (0, B_pad - B), (0, 0)))
    c0p = jnp.pad(c0.astype(jnp.float32), ((0, 0), (0, B_pad - B), (0, 0)))

    # Host-side weight fusion:
    #   fc_in | fc_res share the x operand -> one (IN, M+OUT) slab matmul
    #   LSTM layer 1: [w_ih1 ; w_hh1]     -> one (2M, 4M) recurrent matmul/step
    w_x = jnp.concatenate([params["w_in"], params["w_res"]], axis=1)
    b_x = jnp.concatenate([params["b_in"], params["b_res"]], axis=1)
    w_l1 = jnp.concatenate([params["w_ih1"], params["w_hh1"]], axis=0)

    kernel = functools.partial(_rnn_kernel, T=T, B=B_pad, M=M, OUT=OUT,
                               last_tanh=last_tanh)

    vmem = pl.BlockSpec(memory_space=pltpu.MemorySpace.VMEM)

    # Grid-less single-shot call: whole problem resident in VMEM, no
    # double-buffering of the single-shot operands, no grid prologue.
    y_flat, hN, cN = pl.pallas_call(
        kernel,
        in_specs=[vmem] * 12,
        out_specs=[vmem] * 3,
        out_shape=[
            jax.ShapeDtypeStruct((T * B_pad, OUT), jnp.float32),
            jax.ShapeDtypeStruct((2, B_pad, M), jnp.float32),
            jax.ShapeDtypeStruct((2, B_pad, M), jnp.float32),
        ],
        scratch_shapes=[pltpu.VMEM((T * B_pad, M), jnp.float32)],
    )(x_flat, h0p, c0p,
      w_x, b_x,
      params["w_ih0"], params["w_hh0"], params["b0"],
      w_l1, params["b1"],
      params["w_out"], params["b_out"])

    y = jnp.transpose(y_flat.reshape(T, B_pad, OUT)[:, :B, :], (1, 0, 2))
    return y, (hN[:, :B, :], cN[:, :B, :])


# ----------------------------------------------------------------------------
# Pure-JAX reference for validation
# ----------------------------------------------------------------------------
def rnn_model_reference(x_btd, h0, c0, p, *, last_tanh=True):
    x_tm = jnp.transpose(x_btd, (1, 0, 2)).astype(jnp.float32)  # (T, B, IN)
    feat = x_tm @ p["w_in"] + p["b_in"]
    feat = jnp.where(feat > 0, feat, 0.01 * feat)

    def lstm_layer(seq, h_init, c_init, w_ih, w_hh, b):
        def step(carry, xt):
            h, c = carry
            gates = xt @ w_ih + h @ w_hh + b
            i, f, g, o = jnp.split(gates, 4, axis=-1)
            i = jax.nn.sigmoid(i); f = jax.nn.sigmoid(f)
            g = jnp.tanh(g); o = jax.nn.sigmoid(o)
            c = f * c + i * g
            h = o * jnp.tanh(c)
            return (h, c), h
        (hN, cN), outs = jax.lax.scan(step, (h_init, c_init), seq)
        return outs, hN, cN

    out0, h0n, c0n = lstm_layer(feat, h0[0], c0[0], p["w_ih0"], p["w_hh0"], p["b0"][0])
    out1, h1n, c1n = lstm_layer(out0, h0[1], c0[1], p["w_ih1"], p["w_hh1"], p["b1"][0])

    res = jnp.tanh(x_tm @ p["w_res"] + p["b_res"])
    y = (res + out1) @ p["w_out"] + p["b_out"]
    if last_tanh:
        y = jnp.tanh(y)
    return (jnp.transpose(y, (1, 0, 2)),
            (jnp.stack([h0n, h1n]), jnp.stack([c0n, c1n])))


# ----------------------------------------------------------------------------
# Deterministic parameter construction (mirrors the module's init choices in spirit)
# ----------------------------------------------------------------------------
def make_params(key, in_dim, memory_dim, out_dim):
    M = memory_dim
    ks = jax.random.split(key, 10)

    def kaiming(k, fan_in, shape, gain):
        return (gain / math.sqrt(fan_in)) * jax.random.normal(k, shape, jnp.float32)

    def default_uniform(k, fan_in, shape):
        bound = 1.0 / math.sqrt(fan_in)
        return jax.random.uniform(k, shape, jnp.float32, -bound, bound)

    leaky_gain = math.sqrt(2.0 / (1.0 + 0.01 ** 2))

    # orthogonal init for weight_hh_l0 (stored transposed: (M, 4M))
    q, _ = jnp.linalg.qr(jax.random.normal(ks[2], (4 * M, M), jnp.float32))
    w_hh0 = jnp.transpose(q)

    return {
        # fc_in: kaiming normal (fan_in, leaky_relu), zero bias
        "w_in": kaiming(ks[0], in_dim, (in_dim, M), leaky_gain),
        "b_in": jnp.zeros((1, M), jnp.float32),
        # LSTM layer 0: kaiming ih, orthogonal hh, zero biases
        "w_ih0": kaiming(ks[1], M, (M, 4 * M), leaky_gain),
        "w_hh0": w_hh0,
        "b0": jnp.zeros((1, 4 * M), jnp.float32),
        # LSTM layer 1: PyTorch default uniform init (b_ih_l1 + b_hh_l1 folded)
        "w_ih1": default_uniform(ks[3], M, (M, 4 * M)),
        "w_hh1": default_uniform(ks[4], M, (M, 4 * M)),
        "b1": default_uniform(ks[5], M, (1, 4 * M)),
        # fc_res: PyTorch default Linear init
        "w_res": default_uniform(ks[6], in_dim, (in_dim, out_dim)),
        "b_res": default_uniform(ks[7], in_dim, (1, out_dim)),
        # fc_out: kaiming normal (linear gain = 1), zero bias
        "w_out": kaiming(ks[8], M, (M, out_dim), 1.0),
        "b_out": jnp.zeros((1, out_dim), jnp.float32),
    }


if __name__ == "__main__":
    B, T, IN, M = 2, 8, 16, 32
    OUT = M                      # residual add in the module forces out_dim == memory_dim
    LAST_TANH = True             # config['policy_lastlayer_tanh']

    key = jax.random.PRNGKey(0)
    k_x, k_h, k_c, k_p = jax.random.split(key, 4)

    x = jax.random.normal(k_x, (B, T, IN), jnp.float32)
    h0 = jax.random.normal(k_h, (2, B, M), jnp.float32) * 0.1
    c0 = jax.random.normal(k_c, (2, B, M), jnp.float32) * 0.1
    params = make_params(k_p, IN, M, OUT)

    y, (hN, cN) = rnn_model_forward(x, h0, c0, params, last_tanh=LAST_TANH)
    jax.block_until_ready((y, hN, cN))

    y_ref, (hN_ref, cN_ref) = rnn_model_reference(x, h0, c0, params, last_tanh=LAST_TANH)
    assert jnp.allclose(y, y_ref, atol=1e-4, rtol=1e-4)
    assert jnp.allclose(hN, hN_ref, atol=1e-4, rtol=1e-4)
    assert jnp.allclose(cN, cN_ref, atol=1e-4, rtol=1e-4)

    print("KERNEL_OK")
</pallas_src>

<mosaic_0001>
module attributes {stable_mosaic.version = 11 : i64} {
  func.func @_rnn_kernel(%arg0: memref<64x16xf32, #tpu.memory_space<vmem>>, %arg1: memref<2x8x32xf32, #tpu.memory_space<vmem>>, %arg2: memref<2x8x32xf32, #tpu.memory_space<vmem>>, %arg3: memref<16x64xf32, #tpu.memory_space<vmem>>, %arg4: memref<1x64xf32, #tpu.memory_space<vmem>>, %arg5: memref<32x128xf32, #tpu.memory_space<vmem>>, %arg6: memref<32x128xf32, #tpu.memory_space<vmem>>, %arg7: memref<1x128xf32, #tpu.memory_space<vmem>>, %arg8: memref<64x128xf32, #tpu.memory_space<vmem>>, %arg9: memref<1x128xf32, #tpu.memory_space<vmem>>, %arg10: memref<32x32xf32, #tpu.memory_space<vmem>>, %arg11: memref<1x32xf32, #tpu.memory_space<vmem>>, %arg12: memref<64x32xf32, #tpu.memory_space<vmem>>, %arg13: memref<2x8x32xf32, #tpu.memory_space<vmem>>, %arg14: memref<2x8x32xf32, #tpu.memory_space<vmem>>, %arg15: memref<64x32xf32, #tpu.memory_space<vmem>>) attributes {dimension_semantics = [], scalar_prefetch = 0 : i64, scratch_operands = 1 : i64, tpu.core_type = #tpu.core_type<tc>} {
    %c0 = arith.constant 0 : index
    %c0_0 = arith.constant 0 : index
    %0 = vector.load %arg0[%c0, %c0_0] : memref<64x16xf32, #tpu.memory_space<vmem>>, vector<64x16xf32>
    %c0_1 = arith.constant 0 : index
    %c0_2 = arith.constant 0 : index
    %1 = vector.load %arg3[%c0_1, %c0_2] : memref<16x64xf32, #tpu.memory_space<vmem>>, vector<16x64xf32>
    %cst = arith.constant dense<0.000000e+00> : vector<64x64xf32>
    %2 = tpu.matmul %0, %1, %cst {dimension_numbers = #tpu.dot_dimension_numbers<[1], [0], [0], [1], [0, 0, 1, 1], [], []>} : vector<64x16xf32>, vector<16x64xf32>, vector<64x64xf32> -> vector<64x64xf32>
    %c0_3 = arith.constant 0 : index
    %c0_4 = arith.constant 0 : index
    %3 = vector.load %arg4[%c0_3, %c0_4] : memref<1x64xf32, #tpu.memory_space<vmem>>, vector<1x64xf32>
    %4 = vector.broadcast %3 : vector<1x64xf32> to vector<64x64xf32>
    %5 = arith.addf %2, %4 : vector<64x64xf32>
    %6 = vector.extract_strided_slice %5 {offsets = [0, 0], sizes = [64, 32], strides = [1, 1]} : vector<64x64xf32> to vector<64x32xf32>
    %cst_5 = arith.constant 0.000000e+00 : f32
    %7 = vector.broadcast %cst_5 : f32 to vector<64x32xf32>
    %8 = arith.cmpf ogt, %6, %7 : vector<64x32xf32>
    %cst_6 = arith.constant 0.00999999977 : f32
    %9 = vector.broadcast %cst_6 : f32 to vector<64x32xf32>
    %10 = arith.mulf %9, %6 : vector<64x32xf32>
    %11 = arith.select %8, %6, %10 : vector<64x32xi1>, vector<64x32xf32>
    %12 = vector.extract_strided_slice %5 {offsets = [0, 32], sizes = [64, 32], strides = [1, 1]} : vector<64x64xf32> to vector<64x32xf32>
    %13 = math.tanh %12 : vector<64x32xf32>
    %c0_7 = arith.constant 0 : index
    %c0_8 = arith.constant 0 : index
    %14 = vector.load %arg5[%c0_7, %c0_8] : memref<32x128xf32, #tpu.memory_space<vmem>>, vector<32x128xf32>
    %cst_9 = arith.constant dense<0.000000e+00> : vector<64x128xf32>
    %15 = tpu.matmul %11, %14, %cst_9 {dimension_numbers = #tpu.dot_dimension_numbers<[1], [0], [0], [1], [0, 0, 1, 1], [], []>} : vector<64x32xf32>, vector<32x128xf32>, vector<64x128xf32> -> vector<64x128xf32>
    %c0_10 = arith.constant 0 : index
    %c0_11 = arith.constant 0 : index
    %16 = vector.load %arg7[%c0_10, %c0_11] : memref<1x128xf32, #tpu.memory_space<vmem>>, vector<1x128xf32>
    %17 = vector.broadcast %16 : vector<1x128xf32> to vector<64x128xf32>
    %18 = arith.addf %15, %17 : vector<64x128xf32>
    %c0_12 = arith.constant 0 : index
    %c0_13 = arith.constant 0 : index
    %19 = vector.load %arg6[%c0_12, %c0_13] : memref<32x128xf32, #tpu.memory_space<vmem>>, vector<32x128xf32>
    %c0_14 = arith.constant 0 : index
    %c0_15 = arith.constant 0 : index
    %20 = vector.load %arg8[%c0_14, %c0_15] : memref<64x128xf32, #tpu.memory_space<vmem>>, vector<64x128xf32>
    %c0_16 = arith.constant 0 : index
    %c0_17 = arith.constant 0 : index
    %21 = vector.load %arg9[%c0_16, %c0_17] : memref<1x128xf32, #tpu.memory_space<vmem>>, vector<1x128xf32>
    %22 = vector.shape_cast %21 : vector<1x128xf32> to vector<1x128xf32>
    %23 = vector.broadcast %22 : vector<1x128xf32> to vector<8x128xf32>
    %c0_18 = arith.constant 0 : index
    %c0_19 = arith.constant 0 : index
    %c0_20 = arith.constant 0 : index
    %24 = vector.load %arg1[%c0_18, %c0_19, %c0_20] : memref<2x8x32xf32, #tpu.memory_space<vmem>>, vector<1x8x32xf32>
    %25 = vector.shape_cast %24 : vector<1x8x32xf32> to vector<8x32xf32>
    %c0_21 = arith.constant 0 : index
    %c0_22 = arith.constant 0 : index
    %c0_23 = arith.constant 0 : index
    %26 = vector.load %arg2[%c0_21, %c0_22, %c0_23] : memref<2x8x32xf32, #tpu.memory_space<vmem>>, vector<1x8x32xf32>
    %27 = vector.shape_cast %26 : vector<1x8x32xf32> to vector<8x32xf32>
    %c1 = arith.constant 1 : index
    %c0_24 = arith.constant 0 : index
    %c0_25 = arith.constant 0 : index
    %28 = vector.load %arg1[%c1, %c0_24, %c0_25] : memref<2x8x32xf32, #tpu.memory_space<vmem>>, vector<1x8x32xf32>
    %29 = vector.shape_cast %28 : vector<1x8x32xf32> to vector<8x32xf32>
    %c1_26 = arith.constant 1 : index
    %c0_27 = arith.constant 0 : index
    %c0_28 = arith.constant 0 : index
    %30 = vector.load %arg2[%c1_26, %c0_27, %c0_28] : memref<2x8x32xf32, #tpu.memory_space<vmem>>, vector<1x8x32xf32>
    %31 = vector.shape_cast %30 : vector<1x8x32xf32> to vector<8x32xf32>
    %32 = vector.extract_strided_slice %18 {offsets = [0, 0], sizes = [8, 128], strides = [1, 1]} : vector<64x128xf32> to vector<8x128xf32>
    %cst_29 = arith.constant dense<0.000000e+00> : vector<8x128xf32>
    %33 = tpu.matmul %25, %19, %cst_29 {dimension_numbers = #tpu.dot_dimension_numbers<[1], [0], [0], [1], [0, 0, 1, 1], [], []>} : vector<8x32xf32>, vector<32x128xf32>, vector<8x128xf32> -> vector<8x128xf32>
    %34 = arith.addf %32, %33 : vector<8x128xf32>
    %35 = arith.negf %34 : vector<8x128xf32>
    %36 = math.exp %35 : vector<8x128xf32>
    %cst_30 = arith.constant 1.000000e+00 : f32
    %37 = vector.broadcast %cst_30 : f32 to vector<8x128xf32>
    %38 = arith.addf %37, %36 : vector<8x128xf32>
    %39 = arith.divf %37, %38 : vector<8x128xf32>
    %40 = math.tanh %34 : vector<8x128xf32>
    %41 = vector.extract_strided_slice %39 {offsets = [0, 0], sizes = [8, 32], strides = [1, 1]} : vector<8x128xf32> to vector<8x32xf32>
    %42 = vector.extract_strided_slice %39 {offsets = [0, 32], sizes = [8, 32], strides = [1, 1]} : vector<8x128xf32> to vector<8x32xf32>
    %43 = vector.extract_strided_slice %40 {offsets = [0, 64], sizes = [8, 32], strides = [1, 1]} : vector<8x128xf32> to vector<8x32xf32>
    %44 = vector.extract_strided_slice %39 {offsets = [0, 96], sizes = [8, 32], strides = [1, 1]} : vector<8x128xf32> to vector<8x32xf32>
    %45 = arith.mulf %42, %27 : vector<8x32xf32>
    %46 = arith.mulf %41, %43 : vector<8x32xf32>
    %47 = arith.addf %45, %46 : vector<8x32xf32>
    %48 = math.tanh %47 : vector<8x32xf32>
    %49 = arith.mulf %44, %48 : vector<8x32xf32>
    %50 = tpu.concatenate %49, %29 in 1 : vector<8x32xf32>, vector<8x32xf32> -> vector<8x64xf32>
    %cst_31 = arith.constant dense<0.000000e+00> : vector<8x128xf32>
    %51 = tpu.matmul %50, %20, %cst_31 {dimension_numbers = #tpu.dot_dimension_numbers<[1], [0], [0], [1], [0, 0, 1, 1], [], []>} : vector<8x64xf32>, vector<64x128xf32>, vector<8x128xf32> -> vector<8x128xf32>
    %52 = arith.addf %51, %23 : vector<8x128xf32>
    %53 = arith.negf %52 : vector<8x128xf32>
    %54 = math.exp %53 : vector<8x128xf32>
    %cst_32 = arith.constant 1.000000e+00 : f32
    %55 = vector.broadcast %cst_32 : f32 to vector<8x128xf32>
    %56 = arith.addf %55, %54 : vector<8x128xf32>
    %57 = arith.divf %55, %56 : vector<8x128xf32>
    %58 = math.tanh %52 : vector<8x128xf32>
    %59 = vector.extract_strided_slice %57 {offsets = [0, 0], sizes = [8, 32], strides = [1, 1]} : vector<8x128xf32> to vector<8x32xf32>
    %60 = vector.extract_strided_slice %57 {offsets = [0, 32], sizes = [8, 32], strides = [1, 1]} : vector<8x128xf32> to vector<8x32xf32>
    %61 = vector.extract_strided_slice %58 {offsets = [0, 64], sizes = [8, 32], strides = [1, 1]} : vector<8x128xf32> to vector<8x32xf32>
    %62 = vector.extract_strided_slice %57 {offsets = [0, 96], sizes = [8, 32], strides = [1, 1]} : vector<8x128xf32> to vector<8x32xf32>
    %63 = arith.mulf %60, %31 : vector<8x32xf32>
    %64 = arith.mulf %59, %61 : vector<8x32xf32>
    %65 = arith.addf %63, %64 : vector<8x32xf32>
    %66 = math.tanh %65 : vector<8x32xf32>
    %67 = arith.mulf %62, %66 : vector<8x32xf32>
    %c0_33 = arith.constant 0 : index
    %c0_34 = arith.constant 0 : index
    %68 = vector.load %arg15[%c0_33, %c0_34] : memref<64x32xf32, #tpu.memory_space<vmem>>, vector<8x32xf32>
    tpu.vector_store %arg15[%c0_33, %c0_34], %67 {strides = array<i32>} : memref<64x32xf32, #tpu.memory_space<vmem>>, vector<8x32xf32>,
    %69 = vector.extract_strided_slice %18 {offsets = [8, 0], sizes = [8, 128], strides = [1, 1]} : vector<64x128xf32> to vector<8x128xf32>
    %cst_35 = arith.constant dense<0.000000e+00> : vector<8x128xf32>
    %70 = tpu.matmul %49, %19, %cst_35 {dimension_numbers = #tpu.dot_dimension_numbers<[1], [0], [0], [1], [0, 0, 1, 1], [], []>} : vector<8x32xf32>, vector<32x128xf32>, vector<8x128xf32> -> vector<8x128xf32>
    %71 = arith.addf %69, %70 : vector<8x128xf32>
    %72 = arith.negf %71 : vector<8x128xf32>
    %73 = math.exp %72 : vector<8x128xf32>
    %cst_36 = arith.constant 1.000000e+00 : f32
    %74 = vector.broadcast %cst_36 : f32 to vector<8x128xf32>
    %75 = arith.addf %74, %73 : vector<8x128xf32>
    %76 = arith.divf %74, %75 : vector<8x128xf32>
    %77 = math.tanh %71 : vector<8x128xf32>
    %78 = vector.extract_strided_slice %76 {offsets = [0, 0], sizes = [8, 32], strides = [1, 1]} : vector<8x128xf32> to vector<8x32xf32>
    %79 = vector.extract_strided_slice %76 {offsets = [0, 32], sizes = [8, 32], strides = [1, 1]} : vector<8x128xf32> to vector<8x32xf32>
    %80 = vector.extract_strided_slice %77 {offsets = [0, 64], sizes = [8, 32], strides = [1, 1]} : vector<8x128xf32> to vector<8x32xf32>
    %81 = vector.extract_strided_slice %76 {offsets = [0, 96], sizes = [8, 32], strides = [1, 1]} : vector<8x128xf32> to vector<8x32xf32>
    %82 = arith.mulf %79, %47 : vector<8x32xf32>
    %83 = arith.mulf %78, %80 : vector<8x32xf32>
    %84 = arith.addf %82, %83 : vector<8x32xf32>
    %85 = math.tanh %84 : vector<8x32xf32>
    %86 = arith.mulf %81, %85 : vector<8x32xf32>
    %87 = tpu.concatenate %86, %67 in 1 : vector<8x32xf32>, vector<8x32xf32> -> vector<8x64xf32>
    %cst_37 = arith.constant dense<0.000000e+00> : vector<8x128xf32>
    %88 = tpu.matmul %87, %20, %cst_37 {dimension_numbers = #tpu.dot_dimension_numbers<[1], [0], [0], [1], [0, 0, 1, 1], [], []>} : vector<8x64xf32>, vector<64x128xf32>, vector<8x128xf32> -> vector<8x128xf32>
    %89 = arith.addf %88, %23 : vector<8x128xf32>
    %90 = arith.negf %89 : vector<8x128xf32>
    %91 = math.exp %90 : vector<8x128xf32>
    %cst_38 = arith.constant 1.000000e+00 : f32
    %92 = vector.broadcast %cst_38 : f32 to vector<8x128xf32>
    %93 = arith.addf %92, %91 : vector<8x128xf32>
    %94 = arith.divf %92, %93 : vector<8x128xf32>
    %95 = math.tanh %89 : vector<8x128xf32>
    %96 = vector.extract_strided_slice %94 {offsets = [0, 0], sizes = [8, 32], strides = [1, 1]} : vector<8x128xf32> to vector<8x32xf32>
    %97 = vector.extract_strided_slice %94 {offsets = [0, 32], sizes = [8, 32], strides = [1, 1]} : vector<8x128xf32> to vector<8x32xf32>
    %98 = vector.extract_strided_slice %95 {offsets = [0, 64], sizes = [8, 32], strides = [1, 1]} : vector<8x128xf32> to vector<8x32xf32>
    %99 = vector.extract_strided_slice %94 {offsets = [0, 96], sizes = [8, 32], strides = [1, 1]} : vector<8x128xf32> to vector<8x32xf32>
    %100 = arith.mulf %97, %65 : vector<8x32xf32>
    %101 = arith.mulf %96, %98 : vector<8x32xf32>
    %102 = arith.addf %100, %101 : vector<8x32xf32>
    %103 = math.tanh %102 : vector<8x32xf32>
    %104 = arith.mulf %99, %103 : vector<8x32xf32>
    %c8 = arith.constant 8 : index
    %c0_39 = arith.constant 0 : index
    %105 = vector.load %arg15[%c8, %c0_39] : memref<64x32xf32, #tpu.memory_space<vmem>>, vector<8x32xf32>
    tpu.vector_store %arg15[%c8, %c0_39], %104 {strides = array<i32>} : memref<64x32xf32, #tpu.memory_space<vmem>>, vector<8x32xf32>,
    %106 = vector.extract_strided_slice %18 {offsets = [16, 0], sizes = [8, 128], strides = [1, 1]} : vector<64x128xf32> to vector<8x128xf32>
    %cst_40 = arith.constant dense<0.000000e+00> : vector<8x128xf32>
    %107 = tpu.matmul %86, %19, %cst_40 {dimension_numbers = #tpu.dot_dimension_numbers<[1], [0], [0], [1], [0, 0, 1, 1], [], []>} : vector<8x32xf32>, vector<32x128xf32>, vector<8x128xf32> -> vector<8x128xf32>
    %108 = arith.addf %106, %107 : vector<8x128xf32>
    %109 = arith.negf %108 : vector<8x128xf32>
    %110 = math.exp %109 : vector<8x128xf32>
    %cst_41 = arith.constant 1.000000e+00 : f32
    %111 = vector.broadcast %cst_41 : f32 to vector<8x128xf32>
    %112 = arith.addf %111, %110 : vector<8x128xf32>
    %113 = arith.divf %111, %112 : vector<8x128xf32>
    %114 = math.tanh %108 : vector<8x128xf32>
    %115 = vector.extract_strided_slice %113 {offsets = [0, 0], sizes = [8, 32], strides = [1, 1]} : vector<8x128xf32> to vector<8x32xf32>
    %116 = vector.extract_strided_slice %113 {offsets = [0, 32], sizes = [8, 32], strides = [1, 1]} : vector<8x128xf32> to vector<8x32xf32>
    %117 = vector.extract_strided_slice %114 {offsets = [0, 64], sizes = [8, 32], strides = [1, 1]} : vector<8x128xf32> to vector<8x32xf32>
    %118 = vector.extract_strided_slice %113 {offsets = [0, 96], sizes = [8, 32], strides = [1, 1]} : vector<8x128xf32> to vector<8x32xf32>
    %119 = arith.mulf %116, %84 : vector<8x32xf32>
    %120 = arith.mulf %115, %117 : vector<8x32xf32>
    %121 = arith.addf %119, %120 : vector<8x32xf32>
    %122 = math.tanh %121 : vector<8x32xf32>
    %123 = arith.mulf %118, %122 : vector<8x32xf32>
    %124 = tpu.concatenate %123, %104 in 1 : vector<8x32xf32>, vector<8x32xf32> -> vector<8x64xf32>
    %cst_42 = arith.constant dense<0.000000e+00> : vector<8x128xf32>
    %125 = tpu.matmul %124, %20, %cst_42 {dimension_numbers = #tpu.dot_dimension_numbers<[1], [0], [0], [1], [0, 0, 1, 1], [], []>} : vector<8x64xf32>, vector<64x128xf32>, vector<8x128xf32> -> vector<8x128xf32>
    %126 = arith.addf %125, %23 : vector<8x128xf32>
    %127 = arith.negf %126 : vector<8x128xf32>
    %128 = math.exp %127 : vector<8x128xf32>
    %cst_43 = arith.constant 1.000000e+00 : f32
    %129 = vector.broadcast %cst_43 : f32 to vector<8x128xf32>
    %130 = arith.addf %129, %128 : vector<8x128xf32>
    %131 = arith.divf %129, %130 : vector<8x128xf32>
    %132 = math.tanh %126 : vector<8x128xf32>
    %133 = vector.extract_strided_slice %131 {offsets = [0, 0], sizes = [8, 32], strides = [1, 1]} : vector<8x128xf32> to vector<8x32xf32>
    %134 = vector.extract_strided_slice %131 {offsets = [0, 32], sizes = [8, 32], strides = [1, 1]} : vector<8x128xf32> to vector<8x32xf32>
    %135 = vector.extract_strided_slice %132 {offsets = [0, 64], sizes = [8, 32], strides = [1, 1]} : vector<8x128xf32> to vector<8x32xf32>
    %136 = vector.extract_strided_slice %131 {offsets = [0, 96], sizes = [8, 32], strides = [1, 1]} : vector<8x128xf32> to vector<8x32xf32>
    %137 = arith.mulf %134, %102 : vector<8x32xf32>
    %138 = arith.mulf %133, %135 : vector<8x32xf32>
    %139 = arith.addf %137, %138 : vector<8x32xf32>
    %140 = math.tanh %139 : vector<8x32xf32>
    %141 = arith.mulf %136, %140 : vector<8x32xf32>
    %c16 = arith.constant 16 : index
    %c0_44 = arith.constant 0 : index
    %142 = vector.load %arg15[%c16, %c0_44] : memref<64x32xf32, #tpu.memory_space<vmem>>, vector<8x32xf32>
    tpu.vector_store %arg15[%c16, %c0_44], %141 {strides = array<i32>} : memref<64x32xf32, #tpu.memory_space<vmem>>, vector<8x32xf32>,
    %143 = vector.extract_strided_slice %18 {offsets = [24, 0], sizes = [8, 128], strides = [1, 1]} : vector<64x128xf32> to vector<8x128xf32>
    %cst_45 = arith.constant dense<0.000000e+00> : vector<8x128xf32>
    %144 = tpu.matmul %123, %19, %cst_45 {dimension_numbers = #tpu.dot_dimension_numbers<[1], [0], [0], [1], [0, 0, 1, 1], [], []>} : vector<8x32xf32>, vector<32x128xf32>, vector<8x128xf32> -> vector<8x128xf32>
    %145 = arith.addf %143, %144 : vector<8x128xf32>
    %146 = arith.negf %145 : vector<8x128xf32>
    %147 = math.exp %146 : vector<8x128xf32>
    %cst_46 = arith.constant 1.000000e+00 : f32
    %148 = vector.broadcast %cst_46 : f32 to vector<8x128xf32>
    %149 = arith.addf %148, %147 : vector<8x128xf32>
    %150 = arith.divf %148, %149 : vector<8x128xf32>
    %151 = math.tanh %145 : vector<8x128xf32>
    %152 = vector.extract_strided_slice %150 {offsets = [0, 0], sizes = [8, 32], strides = [1, 1]} : vector<8x128xf32> to vector<8x32xf32>
    %153 = vector.extract_strided_slice %150 {offsets = [0, 32], sizes = [8, 32], strides = [1, 1]} : vector<8x128xf32> to vector<8x32xf32>
    %154 = vector.extract_strided_slice %151 {offsets = [0, 64], sizes = [8, 32], strides = [1, 1]} : vector<8x128xf32> to vector<8x32xf32>
    %155 = vector.extract_strided_slice %150 {offsets = [0, 96], sizes = [8, 32], strides = [1, 1]} : vector<8x128xf32> to vector<8x32xf32>
    %156 = arith.mulf %153, %121 : vector<8x32xf32>
    %157 = arith.mulf %152, %154 : vector<8x32xf32>
    %158 = arith.addf %156, %157 : vector<8x32xf32>
    %159 = math.tanh %158 : vector<8x32xf32>
    %160 = arith.mulf %155, %159 : vector<8x32xf32>
    %161 = tpu.concatenate %160, %141 in 1 : vector<8x32xf32>, vector<8x32xf32> -> vector<8x64xf32>
    %cst_47 = arith.constant dense<0.000000e+00> : vector<8x128xf32>
    %162 = tpu.matmul %161, %20, %cst_47 {dimension_numbers = #tpu.dot_dimension_numbers<[1], [0], [0], [1], [0, 0, 1, 1], [], []>} : vector<8x64xf32>, vector<64x128xf32>, vector<8x128xf32> -> vector<8x128xf32>
    %163 = arith.addf %162, %23 : vector<8x128xf32>
    %164 = arith.negf %163 : vector<8x128xf32>
    %165 = math.exp %164 : vector<8x128xf32>
    %cst_48 = arith.constant 1.000000e+00 : f32
    %166 = vector.broadcast %cst_48 : f32 to vector<8x128xf32>
    %167 = arith.addf %166, %165 : vector<8x128xf32>
    %168 = arith.divf %166, %167 : vector<8x128xf32>
    %169 = math.tanh %163 : vector<8x128xf32>
    %170 = vector.extract_strided_slice %168 {offsets = [0, 0], sizes = [8, 32], strides = [1, 1]} : vector<8x128xf32> to vector<8x32xf32>
    %171 = vector.extract_strided_slice %168 {offsets = [0, 32], sizes = [8, 32], strides = [1, 1]} : vector<8x128xf32> to vector<8x32xf32>
    %172 = vector.extract_strided_slice %169 {offsets = [0, 64], sizes = [8, 32], strides = [1, 1]} : vector<8x128xf32> to vector<8x32xf32>
    %173 = vector.extract_strided_slice %168 {offsets = [0, 96], sizes = [8, 32], strides = [1, 1]} : vector<8x128xf32> to vector<8x32xf32>
    %174 = arith.mulf %171, %139 : vector<8x32xf32>
    %175 = arith.mulf %170, %172 : vector<8x32xf32>
    %176 = arith.addf %174, %175 : vector<8x32xf32>
    %177 = math.tanh %176 : vector<8x32xf32>
    %178 = arith.mulf %173, %177 : vector<8x32xf32>
    %c24 = arith.constant 24 : index
    %c0_49 = arith.constant 0 : index
    %179 = vector.load %arg15[%c24, %c0_49] : memref<64x32xf32, #tpu.memory_space<vmem>>, vector<8x32xf32>
    tpu.vector_store %arg15[%c24, %c0_49], %178 {strides = array<i32>} : memref<64x32xf32, #tpu.memory_space<vmem>>, vector<8x32xf32>,
    %180 = vector.extract_strided_slice %18 {offsets = [32, 0], sizes = [8, 128], strides = [1, 1]} : vector<64x128xf32> to vector<8x128xf32>
    %cst_50 = arith.constant dense<0.000000e+00> : vector<8x128xf32>
    %181 = tpu.matmul %160, %19, %cst_50 {dimension_numbers = #tpu.dot_dimension_numbers<[1], [0], [0], [1], [0, 0, 1, 1], [], []>} : vector<8x32xf32>, vector<32x128xf32>, vector<8x128xf32> -> vector<8x128xf32>
    %182 = arith.addf %180, %181 : vector<8x128xf32>
    %183 = arith.negf %182 : vector<8x128xf32>
    %184 = math.exp %183 : vector<8x128xf32>
    %cst_51 = arith.constant 1.000000e+00 : f32
    %185 = vector.broadcast %cst_51 : f32 to vector<8x128xf32>
    %186 = arith.addf %185, %184 : vector<8x128xf32>
    %187 = arith.divf %185, %186 : vector<8x128xf32>
    %188 = math.tanh %182 : vector<8x128xf32>
    %189 = vector.extract_strided_slice %187 {offsets = [0, 0], sizes = [8, 32], strides = [1, 1]} : vector<8x128xf32> to vector<8x32xf32>
    %190 = vector.extract_strided_slice %187 {offsets = [0, 32], sizes = [8, 32], strides = [1, 1]} : vector<8x128xf32> to vector<8x32xf32>
    %191 = vector.extract_strided_slice %188 {offsets = [0, 64], sizes = [8, 32], strides = [1, 1]} : vector<8x128xf32> to vector<8x32xf32>
    %192 = vector.extract_strided_slice %187 {offsets = [0, 96], sizes = [8, 32], strides = [1, 1]} : vector<8x128xf32> to vector<8x32xf32>
    %193 = arith.mulf %190, %158 : vector<8x32xf32>
    %194 = arith.mulf %189, %191 : vector<8x32xf32>
    %195 = arith.addf %193, %194 : vector<8x32xf32>
    %196 = math.tanh %195 : vector<8x32xf32>
    %197 = arith.mulf %192, %196 : vector<8x32xf32>
    %198 = tpu.concatenate %197, %178 in 1 : vector<8x32xf32>, vector<8x32xf32> -> vector<8x64xf32>
    %cst_52 = arith.constant dense<0.000000e+00> : vector<8x128xf32>
    %199 = tpu.matmul %198, %20, %cst_52 {dimension_numbers = #tpu.dot_dimension_numbers<[1], [0], [0], [1], [0, 0, 1, 1], [], []>} : vector<8x64xf32>, vector<64x128xf32>, vector<8x128xf32> -> vector<8x128xf32>
    %200 = arith.addf %199, %23 : vector<8x128xf32>
    %201 = arith.negf %200 : vector<8x128xf32>
    %202 = math.exp %201 : vector<8x128xf32>
    %cst_53 = arith.constant 1.000000e+00 : f32
    %203 = vector.broadcast %cst_53 : f32 to vector<8x128xf32>
    %204 = arith.addf %203, %202 : vector<8x128xf32>
    %205 = arith.divf %203, %204 : vector<8x128xf32>
    %206 = math.tanh %200 : vector<8x128xf32>
    %207 = vector.extract_strided_slice %205 {offsets = [0, 0], sizes = [8, 32], strides = [1, 1]} : vector<8x128xf32> to vector<8x32xf32>
    %208 = vector.extract_strided_slice %205 {offsets = [0, 32], sizes = [8, 32], strides = [1, 1]} : vector<8x128xf32> to vector<8x32xf32>
    %209 = vector.extract_strided_slice %206 {offsets = [0, 64], sizes = [8, 32], strides = [1, 1]} : vector<8x128xf32> to vector<8x32xf32>
    %210 = vector.extract_strided_slice %205 {offsets = [0, 96], sizes = [8, 32], strides = [1, 1]} : vector<8x128xf32> to vector<8x32xf32>
    %211 = arith.mulf %208, %176 : vector<8x32xf32>
    %212 = arith.mulf %207, %209 : vector<8x32xf32>
    %213 = arith.addf %211, %212 : vector<8x32xf32>
    %214 = math.tanh %213 : vector<8x32xf32>
    %215 = arith.mulf %210, %214 : vector<8x32xf32>
    %c32 = arith.constant 32 : index
    %c0_54 = arith.constant 0 : index
    %216 = vector.load %arg15[%c32, %c0_54] : memref<64x32xf32, #tpu.memory_space<vmem>>, vector<8x32xf32>
    tpu.vector_store %arg15[%c32, %c0_54], %215 {strides = array<i32>} : memref<64x32xf32, #tpu.memory_space<vmem>>, vector<8x32xf32>,
    %217 = vector.extract_strided_slice %18 {offsets = [40, 0], sizes = [8, 128], strides = [1, 1]} : vector<64x128xf32> to vector<8x128xf32>
    %cst_55 = arith.constant dense<0.000000e+00> : vector<8x128xf32>
    %218 = tpu.matmul %197, %19, %cst_55 {dimension_numbers = #tpu.dot_dimension_numbers<[1], [0], [0], [1], [0, 0, 1, 1], [], []>} : vector<8x32xf32>, vector<32x128xf32>, vector<8x128xf32> -> vector<8x128xf32>
    %219 = arith.addf %217, %218 : vector<8x128xf32>
    %220 = arith.negf %219 : vector<8x128xf32>
    %221 = math.exp %220 : vector<8x128xf32>
    %cst_56 = arith.constant 1.000000e+00 : f32
    %222 = vector.broadcast %cst_56 : f32 to vector<8x128xf32>
    %223 = arith.addf %222, %221 : vector<8x128xf32>
    %224 = arith.divf %222, %223 : vector<8x128xf32>
    %225 = math.tanh %219 : vector<8x128xf32>
    %226 = vector.extract_strided_slice %224 {offsets = [0, 0], sizes = [8, 32], strides = [1, 1]} : vector<8x128xf32> to vector<8x32xf32>
    %227 = vector.extract_strided_slice %224 {offsets = [0, 32], sizes = [8, 32], strides = [1, 1]} : vector<8x128xf32> to vector<8x32xf32>
    %228 = vector.extract_strided_slice %225 {offsets = [0, 64], sizes = [8, 32], strides = [1, 1]} : vector<8x128xf32> to vector<8x32xf32>
    %229 = vector.extract_strided_slice %224 {offsets = [0, 96], sizes = [8, 32], strides = [1, 1]} : vector<8x128xf32> to vector<8x32xf32>
    %230 = arith.mulf %227, %195 : vector<8x32xf32>
    %231 = arith.mulf %226, %228 : vector<8x32xf32>
    %232 = arith.addf %230, %231 : vector<8x32xf32>
    %233 = math.tanh %232 : vector<8x32xf32>
    %234 = arith.mulf %229, %233 : vector<8x32xf32>
    %235 = tpu.concatenate %234, %215 in 1 : vector<8x32xf32>, vector<8x32xf32> -> vector<8x64xf32>
    %cst_57 = arith.constant dense<0.000000e+00> : vector<8x128xf32>
    %236 = tpu.matmul %235, %20, %cst_57 {dimension_numbers = #tpu.dot_dimension_numbers<[1], [0], [0], [1], [0, 0, 1, 1], [], []>} : vector<8x64xf32>, vector<64x128xf32>, vector<8x128xf32> -> vector<8x128xf32>
    %237 = arith.addf %236, %23 : vector<8x128xf32>
    %238 = arith.negf %237 : vector<8x128xf32>
    %239 = math.exp %238 : vector<8x128xf32>
    %cst_58 = arith.constant 1.000000e+00 : f32
    %240 = vector.broadcast %cst_58 : f32 to vector<8x128xf32>
    %241 = arith.addf %240, %239 : vector<8x128xf32>
    %242 = arith.divf %240, %241 : vector<8x128xf32>
    %243 = math.tanh %237 : vector<8x128xf32>
    %244 = vector.extract_strided_slice %242 {offsets = [0, 0], sizes = [8, 32], strides = [1, 1]} : vector<8x128xf32> to vector<8x32xf32>
    %245 = vector.extract_strided_slice %242 {offsets = [0, 32], sizes = [8, 32], strides = [1, 1]} : vector<8x128xf32> to vector<8x32xf32>
    %246 = vector.extract_strided_slice %243 {offsets = [0, 64], sizes = [8, 32], strides = [1, 1]} : vector<8x128xf32> to vector<8x32xf32>
    %247 = vector.extract_strided_slice %242 {offsets = [0, 96], sizes = [8, 32], strides = [1, 1]} : vector<8x128xf32> to vector<8x32xf32>
    %248 = arith.mulf %245, %213 : vector<8x32xf32>
    %249 = arith.mulf %244, %246 : vector<8x32xf32>
    %250 = arith.addf %248, %249 : vector<8x32xf32>
    %251 = math.tanh %250 : vector<8x32xf32>
    %252 = arith.mulf %247, %251 : vector<8x32xf32>
    %c40 = arith.constant 40 : index
    %c0_59 = arith.constant 0 : index
    %253 = vector.load %arg15[%c40, %c0_59] : memref<64x32xf32, #tpu.memory_space<vmem>>, vector<8x32xf32>
    tpu.vector_store %arg15[%c40, %c0_59], %252 {strides = array<i32>} : memref<64x32xf32, #tpu.memory_space<vmem>>, vector<8x32xf32>,
    %254 = vector.extract_strided_slice %18 {offsets = [48, 0], sizes = [8, 128], strides = [1, 1]} : vector<64x128xf32> to vector<8x128xf32>
    %cst_60 = arith.constant dense<0.000000e+00> : vector<8x128xf32>
    %255 = tpu.matmul %234, %19, %cst_60 {dimension_numbers = #tpu.dot_dimension_numbers<[1], [0], [0], [1], [0, 0, 1, 1], [], []>} : vector<8x32xf32>, vector<32x128xf32>, vector<8x128xf32> -> vector<8x128xf32>
    %256 = arith.addf %254, %255 : vector<8x128xf32>
    %257 = arith.negf %256 : vector<8x128xf32>
    %258 = math.exp %257 : vector<8x128xf32>
    %cst_61 = arith.constant 1.000000e+00 : f32
    %259 = vector.broadcast %cst_61 : f32 to vector<8x128xf32>
    %260 = arith.addf %259, %258 : vector<8x128xf32>
    %261 = arith.divf %259, %260 : vector<8x128xf32>
    %262 = math.tanh %256 : vector<8x128xf32>
    %263 = vector.extract_strided_slice %261 {offsets = [0, 0], sizes = [8, 32], strides = [1, 1]} : vector<8x128xf32> to vector<8x32xf32>
    %264 = vector.extract_strided_slice %261 {offsets = [0, 32], sizes = [8, 32], strides = [1, 1]} : vector<8x128xf32> to vector<8x32xf32>
    %265 = vector.extract_strided_slice %262 {offsets = [0, 64], sizes = [8, 32], strides = [1, 1]} : vector<8x128xf32> to vector<8x32xf32>
    %266 = vector.extract_strided_slice %261 {offsets = [0, 96], sizes = [8, 32], strides = [1, 1]} : vector<8x128xf32> to vector<8x32xf32>
    %267 = arith.mulf %264, %232 : vector<8x32xf32>
    %268 = arith.mulf %263, %265 : vector<8x32xf32>
    %269 = arith.addf %267, %268 : vector<8x32xf32>
    %270 = math.tanh %269 : vector<8x32xf32>
    %271 = arith.mulf %266, %270 : vector<8x32xf32>
    %272 = tpu.concatenate %271, %252 in 1 : vector<8x32xf32>, vector<8x32xf32> -> vector<8x64xf32>
    %cst_62 = arith.constant dense<0.000000e+00> : vector<8x128xf32>
    %273 = tpu.matmul %272, %20, %cst_62 {dimension_numbers = #tpu.dot_dimension_numbers<[1], [0], [0], [1], [0, 0, 1, 1], [], []>} : vector<8x64xf32>, vector<64x128xf32>, vector<8x128xf32> -> vector<8x128xf32>
    %274 = arith.addf %273, %23 : vector<8x128xf32>
    %275 = arith.negf %274 : vector<8x128xf32>
    %276 = math.exp %275 : vector<8x128xf32>
    %cst_63 = arith.constant 1.000000e+00 : f32
    %277 = vector.broadcast %cst_63 : f32 to vector<8x128xf32>
    %278 = arith.addf %277, %276 : vector<8x128xf32>
    %279 = arith.divf %277, %278 : vector<8x128xf32>
    %280 = math.tanh %274 : vector<8x128xf32>
    %281 = vector.extract_strided_slice %279 {offsets = [0, 0], sizes = [8, 32], strides = [1, 1]} : vector<8x128xf32> to vector<8x32xf32>
    %282 = vector.extract_strided_slice %279 {offsets = [0, 32], sizes = [8, 32], strides = [1, 1]} : vector<8x128xf32> to vector<8x32xf32>
    %283 = vector.extract_strided_slice %280 {offsets = [0, 64], sizes = [8, 32], strides = [1, 1]} : vector<8x128xf32> to vector<8x32xf32>
    %284 = vector.extract_strided_slice %279 {offsets = [0, 96], sizes = [8, 32], strides = [1, 1]} : vector<8x128xf32> to vector<8x32xf32>
    %285 = arith.mulf %282, %250 : vector<8x32xf32>
    %286 = arith.mulf %281, %283 : vector<8x32xf32>
    %287 = arith.addf %285, %286 : vector<8x32xf32>
    %288 = math.tanh %287 : vector<8x32xf32>
    %289 = arith.mulf %284, %288 : vector<8x32xf32>
    %c48 = arith.constant 48 : index
    %c0_64 = arith.constant 0 : index
    %290 = vector.load %arg15[%c48, %c0_64] : memref<64x32xf32, #tpu.memory_space<vmem>>, vector<8x32xf32>
    tpu.vector_store %arg15[%c48, %c0_64], %289 {strides = array<i32>} : memref<64x32xf32, #tpu.memory_space<vmem>>, vector<8x32xf32>,
    %291 = vector.extract_strided_slice %18 {offsets = [56, 0], sizes = [8, 128], strides = [1, 1]} : vector<64x128xf32> to vector<8x128xf32>
    %cst_65 = arith.constant dense<0.000000e+00> : vector<8x128xf32>
    %292 = tpu.matmul %271, %19, %cst_65 {dimension_numbers = #tpu.dot_dimension_numbers<[1], [0], [0], [1], [0, 0, 1, 1], [], []>} : vector<8x32xf32>, vector<32x128xf32>, vector<8x128xf32> -> vector<8x128xf32>
    %293 = arith.addf %291, %292 : vector<8x128xf32>
    %294 = arith.negf %293 : vector<8x128xf32>
    %295 = math.exp %294 : vector<8x128xf32>
    %cst_66 = arith.constant 1.000000e+00 : f32
    %296 = vector.broadcast %cst_66 : f32 to vector<8x128xf32>
    %297 = arith.addf %296, %295 : vector<8x128xf32>
    %298 = arith.divf %296, %297 : vector<8x128xf32>
    %299 = math.tanh %293 : vector<8x128xf32>
    %300 = vector.extract_strided_slice %298 {offsets = [0, 0], sizes = [8, 32], strides = [1, 1]} : vector<8x128xf32> to vector<8x32xf32>
    %301 = vector.extract_strided_slice %298 {offsets = [0, 32], sizes = [8, 32], strides = [1, 1]} : vector<8x128xf32> to vector<8x32xf32>
    %302 = vector.extract_strided_slice %299 {offsets = [0, 64], sizes = [8, 32], strides = [1, 1]} : vector<8x128xf32> to vector<8x32xf32>
    %303 = vector.extract_strided_slice %298 {offsets = [0, 96], sizes = [8, 32], strides = [1, 1]} : vector<8x128xf32> to vector<8x32xf32>
    %304 = arith.mulf %301, %269 : vector<8x32xf32>
    %305 = arith.mulf %300, %302 : vector<8x32xf32>
    %306 = arith.addf %304, %305 : vector<8x32xf32>
    %307 = math.tanh %306 : vector<8x32xf32>
    %308 = arith.mulf %303, %307 : vector<8x32xf32>
    %309 = tpu.concatenate %308, %289 in 1 : vector<8x32xf32>, vector<8x32xf32> -> vector<8x64xf32>
    %cst_67 = arith.constant dense<0.000000e+00> : vector<8x128xf32>
    %310 = tpu.matmul %309, %20, %cst_67 {dimension_numbers = #tpu.dot_dimension_numbers<[1], [0], [0], [1], [0, 0, 1, 1], [], []>} : vector<8x64xf32>, vector<64x128xf32>, vector<8x128xf32> -> vector<8x128xf32>
    %311 = arith.addf %310, %23 : vector<8x128xf32>
    %312 = arith.negf %311 : vector<8x128xf32>
    %313 = math.exp %312 : vector<8x128xf32>
    %cst_68 = arith.constant 1.000000e+00 : f32
    %314 = vector.broadcast %cst_68 : f32 to vector<8x128xf32>
    %315 = arith.addf %314, %313 : vector<8x128xf32>
    %316 = arith.divf %314, %315 : vector<8x128xf32>
    %317 = math.tanh %311 : vector<8x128xf32>
    %318 = vector.extract_strided_slice %316 {offsets = [0, 0], sizes = [8, 32], strides = [1, 1]} : vector<8x128xf32> to vector<8x32xf32>
    %319 = vector.extract_strided_slice %316 {offsets = [0, 32], sizes = [8, 32], strides = [1, 1]} : vector<8x128xf32> to vector<8x32xf32>
    %320 = vector.extract_strided_slice %317 {offsets = [0, 64], sizes = [8, 32], strides = [1, 1]} : vector<8x128xf32> to vector<8x32xf32>
    %321 = vector.extract_strided_slice %316 {offsets = [0, 96], sizes = [8, 32], strides = [1, 1]} : vector<8x128xf32> to vector<8x32xf32>
    %322 = arith.mulf %319, %287 : vector<8x32xf32>
    %323 = arith.mulf %318, %320 : vector<8x32xf32>
    %324 = arith.addf %322, %323 : vector<8x32xf32>
    %325 = math.tanh %324 : vector<8x32xf32>
    %326 = arith.mulf %321, %325 : vector<8x32xf32>
    %c56 = arith.constant 56 : index
    %c0_69 = arith.constant 0 : index
    %327 = vector.load %arg15[%c56, %c0_69] : memref<64x32xf32, #tpu.memory_space<vmem>>, vector<8x32xf32>
    tpu.vector_store %arg15[%c56, %c0_69], %326 {strides = array<i32>} : memref<64x32xf32, #tpu.memory_space<vmem>>, vector<8x32xf32>,
    %c0_70 = arith.constant 0 : index
    %c0_71 = arith.constant 0 : index
    %328 = vector.load %arg15[%c0_70, %c0_71] : memref<64x32xf32, #tpu.memory_space<vmem>>, vector<64x32xf32>
    %329 = arith.addf %13, %328 : vector<64x32xf32>
    %c0_72 = arith.constant 0 : index
    %c0_73 = arith.constant 0 : index
    %330 = vector.load %arg10[%c0_72, %c0_73] : memref<32x32xf32, #tpu.memory_space<vmem>>, vector<32x32xf32>
    %cst_74 = arith.constant dense<0.000000e+00> : vector<64x32xf32>
    %331 = tpu.matmul %329, %330, %cst_74 {dimension_numbers = #tpu.dot_dimension_numbers<[1], [0], [0], [1], [0, 0, 1, 1], [], []>} : vector<64x32xf32>, vector<32x32xf32>, vector<64x32xf32> -> vector<64x32xf32>
    %c0_75 = arith.constant 0 : index
    %c0_76 = arith.constant 0 : index
    %332 = vector.load %arg11[%c0_75, %c0_76] : memref<1x32xf32, #tpu.memory_space<vmem>>, vector<1x32xf32>
    %333 = vector.broadcast %332 : vector<1x32xf32> to vector<64x32xf32>
    %334 = arith.addf %331, %333 : vector<64x32xf32>
    %335 = math.tanh %334 : vector<64x32xf32>
    %c0_77 = arith.constant 0 : index
    %c0_78 = arith.constant 0 : index
    %336 = vector.load %arg12[%c0_77, %c0_78] : memref<64x32xf32, #tpu.memory_space<vmem>>, vector<64x32xf32>
    tpu.vector_store %arg12[%c0_77, %c0_78], %335 {strides = array<i32>} : memref<64x32xf32, #tpu.memory_space<vmem>>, vector<64x32xf32>,
    %c0_79 = arith.constant 0 : index
    %c0_80 = arith.constant 0 : index
    %c0_81 = arith.constant 0 : index
    %337 = vector.load %arg13[%c0_79, %c0_80, %c0_81] : memref<2x8x32xf32, #tpu.memory_space<vmem>>, vector<1x8x32xf32>
    %338 = vector.shape_cast %337 : vector<1x8x32xf32> to vector<8x32xf32>
    %339 = vector.shape_cast %308 : vector<8x32xf32> to vector<1x8x32xf32>
    tpu.vector_store %arg13[%c0_79, %c0_80, %c0_81], %339 {strides = array<i32>} : memref<2x8x32xf32, #tpu.memory_space<vmem>>, vector<1x8x32xf32>,
    %c1_82 = arith.constant 1 : index
    %c0_83 = arith.constant 0 : index
    %c0_84 = arith.constant 0 : index
    %340 = vector.load %arg13[%c1_82, %c0_83, %c0_84] : memref<2x8x32xf32, #tpu.memory_space<vmem>>, vector<1x8x32xf32>
    %341 = vector.shape_cast %340 : vector<1x8x32xf32> to vector<8x32xf32>
    %342 = vector.shape_cast %326 : vector<8x32xf32> to vector<1x8x32xf32>
    tpu.vector_store %arg13[%c1_82, %c0_83, %c0_84], %342 {strides = array<i32>} : memref<2x8x32xf32, #tpu.memory_space<vmem>>, vector<1x8x32xf32>,
    %c0_85 = arith.constant 0 : index
    %c0_86 = arith.constant 0 : index
    %c0_87 = arith.constant 0 : index
    %343 = vector.load %arg14[%c0_85, %c0_86, %c0_87] : memref<2x8x32xf32, #tpu.memory_space<vmem>>, vector<1x8x32xf32>
    %344 = vector.shape_cast %343 : vector<1x8x32xf32> to vector<8x32xf32>
    %345 = vector.shape_cast %306 : vector<8x32xf32> to vector<1x8x32xf32>
    tpu.vector_store %arg14[%c0_85, %c0_86, %c0_87], %345 {strides = array<i32>} : memref<2x8x32xf32, #tpu.memory_space<vmem>>, vector<1x8x32xf32>,
    %c1_88 = arith.constant 1 : index
    %c0_89 = arith.constant 0 : index
    %c0_90 = arith.constant 0 : index
    %346 = vector.load %arg14[%c1_88, %c0_89, %c0_90] : memref<2x8x32xf32, #tpu.memory_space<vmem>>, vector<1x8x32xf32>
    %347 = vector.shape_cast %346 : vector<1x8x32xf32> to vector<8x32xf32>
    %348 = vector.shape_cast %324 : vector<8x32xf32> to vector<1x8x32xf32>
    tpu.vector_store %arg14[%c1_88, %c0_89, %c0_90], %348 {strides = array<i32>} : memref<2x8x32xf32, #tpu.memory_space<vmem>>, vector<1x8x32xf32>,
    return
  }
}

</mosaic_0001>

<llo_original>
// kernel: tpu_custom_call.1
$region0: #{tpu_custom_call.1}
  #allocation0 [shape = 'u32[]', space=smem, size = 0x4, offset = 0x4, fixed_abs, tag = 'smem constant byte address 0x4 - core index']
  #allocation1 [shape = 'u32[144,128]{1,0:T(1,128)}', space=vmem, size = 0x12000, scoped, tag = 'internal scratch']
  #allocation2 [shape = 'f32[64,32]{1,0:T(8,128)}', space=vmem, size = 0x8000, scoped, tag = 'scratch operand']
  %s0 = inlined_call_operand.vmem [shape: f32[64,16], index: 0, kind: input, shape index: {}]
  %s1 = inlined_call_operand.hbm [shape: f32[2,8,32], index: 1, kind: input, shape index: {}]
  %s2 = inlined_call_operand.hbm [shape: f32[2,8,32], index: 2, kind: input, shape index: {}]
  %s3 = inlined_call_operand.hbm [shape: f32[16,64], index: 3, kind: input, shape index: {}]
  %s4 = inlined_call_operand.hbm [shape: f32[1,64], index: 4, kind: input, shape index: {}]
  %s5 = inlined_call_operand.hbm [shape: f32[32,128], index: 5, kind: input, shape index: {}]
  %s6 = inlined_call_operand.hbm [shape: f32[32,128], index: 6, kind: input, shape index: {}]
  %s7 = inlined_call_operand.hbm [shape: f32[1,128], index: 7, kind: input, shape index: {}]
  %s8 = inlined_call_operand.vmem [shape: f32[64,128], index: 8, kind: input, shape index: {}]
  %s9 = inlined_call_operand.hbm [shape: f32[1,128], index: 9, kind: input, shape index: {}]
  %s10 = inlined_call_operand.vmem [shape: f32[32,32], index: 10, kind: input, shape index: {}]
  %s11 = inlined_call_operand.vmem [shape: f32[1,32], index: 11, kind: input, shape index: {}]
  %s12 = inlined_call_operand.vmem [shape: f32[64,32], index: 12, kind: output, shape index: {0}]
  %s13 = inlined_call_operand.hbm [shape: f32[2,8,32], index: 13, kind: output, shape index: {1}]
  %s14 = inlined_call_operand.hbm [shape: f32[2,8,32], index: 14, kind: output, shape index: {2}]
  %15 = xla_tuple %s12, %s13, %s14
  %s16 = sld [smem:[#allocation0]]
  $region106: #{tpu_custom_call.1} parent=0
    _
  %s18 = ssub.s32 1, %s16
  %s19 = scalar_select 0, %s18, %s16
  $region1: #{tpu_custom_call.1} parent=0
    #allocation3 [shape = 'u8[8192]{0}', space=vmem, size = 0x2000, scoped, tag = 'input window, operand 1, single buffered']
    #allocation4 [shape = 's32[1]{0}', space=sflag, size = 0x4, scoped, tag = 'scoped memory for tpu_custom_call.1']
    #allocation5 [shape = 's32[1]{0}', space=sflag, size = 0x4, scoped, tag = 'scoped memory for tpu_custom_call.1']
    #allocation6 [shape = 'u8[8192]{0}', space=vmem, size = 0x2000, scoped, tag = 'input window, operand 2, single buffered']
    #allocation7 [shape = 's32[1]{0}', space=sflag, size = 0x4, scoped, tag = 'scoped memory for tpu_custom_call.1']
    #allocation8 [shape = 'u8[8192]{0}', space=vmem, size = 0x2000, scoped, tag = 'input window, operand 3, single buffered']
    #allocation9 [shape = 'u8[512]{0}', space=vmem, size = 0x400, scoped, tag = 'input window, operand 4, single buffered']
    #allocation10 [shape = 's32[1]{0}', space=sflag, size = 0x4, scoped, tag = 'scoped memory for tpu_custom_call.1']
    #allocation11 [shape = 'u8[16384]{0}', space=vmem, size = 0x4000, scoped, tag = 'input window, operand 5, single buffered']
    #allocation12 [shape = 'u8[16384]{0}', space=vmem, size = 0x4000, scoped, tag = 'input window, operand 6, single buffered']
    #allocation13 [shape = 's32[1]{0}', space=sflag, size = 0x4, scoped, tag = 'scoped memory for tpu_custom_call.1']
    #allocation14 [shape = 'u8[512]{0}', space=vmem, size = 0x400, scoped, tag = 'input window, operand 7, single buffered']
    #allocation15 [shape = 'u8[512]{0}', space=vmem, size = 0x400, scoped, tag = 'input window, operand 9, single buffered']
    #allocation16 [shape = 's32[1]{0}', space=sflag, size = 0x4, scoped, tag = 'scoped memory for tpu_custom_call.1']
    #allocation17 [shape = 'u8[8192]{0}', space=vmem, size = 0x2000, scoped, tag = 'output window, operand 1, single buffered']
    #allocation18 [shape = 'u8[8192]{0}', space=vmem, size = 0x2000, scoped, tag = 'output window, operand 2, single buffered']
    #allocation19 [shape = 's32[1]{0}', space=sflag, size = 0x4, scoped, tag = 'scoped memory for tpu_custom_call.1']
    %20 = vsyncpa [#allocation4], 0
    %21 = vsyncpa [#allocation7], 0
    %22 = vsyncpa [#allocation10], 0
    %23 = vsyncpa [#allocation13], 0
    %24 = vsyncpa [#allocation16], 0
    %25 = vsyncpa [#allocation5], 0
    %26 = vsyncpa [#allocation19], 0
    // Predicated region
    $region2: #{tpu_custom_call.1} parent=1 // pred_check
      _
    $region3: #{tpu_custom_call.1} parent=1 // pred_check_branch
      %28 = sbr.rel (0) target = $region5
    $region4: #{tpu_custom_call.1} parent=1 // pred_region
      _
    $region5: #{tpu_custom_call.1} parent=1 // pred_fallthru
      _
    // Predicated region
    $region6: #{tpu_custom_call.1} parent=1 // pred_check
      _
    $region7: #{tpu_custom_call.1} parent=1 // pred_check_branch
      %30 = sbr.rel (0) target = $region9
    $region8: #{tpu_custom_call.1} parent=1 // pred_region
      %s32 = ssub.s32 256, 256
      %33 = vsyncadd [#allocation4], %s32
      %s34 = sshll.u32 [#allocation3], 4
      %s35 = int_to_ptr.vmem [resolvable:$true] %s34
      %40 = dma.hbm_to_vmem [thread:$0]  %s1, 256, %s35, [#allocation4], 128, 128, 8
    $region9: #{tpu_custom_call.1} parent=1 // pred_fallthru
      _
    // Predicated region
    $region10: #{tpu_custom_call.1} parent=1 // pred_check
      _
    $region11: #{tpu_custom_call.1} parent=1 // pred_check_branch
      %42 = sbr.rel (0) target = $region13
    $region12: #{tpu_custom_call.1} parent=1 // pred_region
      %s44 = ssub.s32 256, 256
      %45 = vsyncadd [#allocation7], %s44
      %s46 = sshll.u32 [#allocation6], 4
      %s47 = int_to_ptr.vmem [resolvable:$true] %s46
      %52 = dma.hbm_to_vmem [thread:$0]  %s2, 256, %s47, [#allocation7], 128, 128, 8
    $region13: #{tpu_custom_call.1} parent=1 // pred_fallthru
      _
    // Predicated region
    $region14: #{tpu_custom_call.1} parent=1 // pred_check
      _
    $region15: #{tpu_custom_call.1} parent=1 // pred_check_branch
      %54 = sbr.rel (0) target = $region17
    $region16: #{tpu_custom_call.1} parent=1 // pred_region
      %s56 = ssub.s32 256, 256
      %57 = vsyncadd [#allocation7], %s56
      %s58 = sshll.u32 [#allocation8], 4
      %s59 = int_to_ptr.vmem [resolvable:$true] %s58
      %64 = dma.hbm_to_vmem [thread:$0]  %s3, 256, %s59, [#allocation7], 128, 128, 8
    $region17: #{tpu_custom_call.1} parent=1 // pred_fallthru
      _
    // Predicated region
    $region18: #{tpu_custom_call.1} parent=1 // pred_check
      _
    $region19: #{tpu_custom_call.1} parent=1 // pred_check_branch
      %66 = sbr.rel (0) target = $region21
    $region20: #{tpu_custom_call.1} parent=1 // pred_region
      %s68 = ssub.s32 16, 16
      %69 = vsyncadd [#allocation10], %s68
      %s71 = sshll.u32 [#allocation9], 4
      %s72 = int_to_ptr.vmem [resolvable:$true] %s71
      %74 = dma.hbm_to_vmem [thread:$0]  %s4, 16, %s72, [#allocation10]
    $region21: #{tpu_custom_call.1} parent=1 // pred_fallthru
      _
    // Predicated region
    $region22: #{tpu_custom_call.1} parent=1 // pred_check
      _
    $region23: #{tpu_custom_call.1} parent=1 // pred_check_branch
      %76 = sbr.rel (0) target = $region25
    $region24: #{tpu_custom_call.1} parent=1 // pred_region
      %s78 = ssub.s32 512, 512
      %79 = vsyncadd [#allocation10], %s78
      %s80 = sshll.u32 [#allocation11], 4
      %s81 = int_to_ptr.vmem [resolvable:$true] %s80
      %86 = dma.hbm_to_vmem [thread:$0]  %s5, 512, %s81, [#allocation10], 128, 128, 8
    $region25: #{tpu_custom_call.1} parent=1 // pred_fallthru
      _
    // Predicated region
    $region26: #{tpu_custom_call.1} parent=1 // pred_check
      _
    $region27: #{tpu_custom_call.1} parent=1 // pred_check_branch
      %88 = sbr.rel (0) target = $region29
    $region28: #{tpu_custom_call.1} parent=1 // pred_region
      %s90 = ssub.s32 512, 512
      %91 = vsyncadd [#allocation13], %s90
      %s92 = sshll.u32 [#allocation12], 4
      %s93 = int_to_ptr.vmem [resolvable:$true] %s92
      %98 = dma.hbm_to_vmem [thread:$0]  %s6, 512, %s93, [#allocation13], 128, 128, 8
    $region29: #{tpu_custom_call.1} parent=1 // pred_fallthru
      _
    // Predicated region
    $region30: #{tpu_custom_call.1} parent=1 // pred_check
      _
    $region31: #{tpu_custom_call.1} parent=1 // pred_check_branch
      %100 = sbr.rel (0) target = $region33
    $region32: #{tpu_custom_call.1} parent=1 // pred_region
      %s102 = ssub.s32 16, 16
      %103 = vsyncadd [#allocation13], %s102
      %s105 = sshll.u32 [#allocation14], 4
      %s106 = int_to_ptr.vmem [resolvable:$true] %s105
      %108 = dma.hbm_to_vmem [thread:$0]  %s7, 16, %s106, [#allocation13]
    $region33: #{tpu_custom_call.1} parent=1 // pred_fallthru
      _
    // Predicated region
    $region34: #{tpu_custom_call.1} parent=1 // pred_check
      _
    $region35: #{tpu_custom_call.1} parent=1 // pred_check_branch
      %110 = sbr.rel (0) target = $region37
    $region36: #{tpu_custom_call.1} parent=1 // pred_region
      _
    $region37: #{tpu_custom_call.1} parent=1 // pred_fallthru
      _
    // Predicated region
    $region38: #{tpu_custom_call.1} parent=1 // pred_check
      _
    $region39: #{tpu_custom_call.1} parent=1 // pred_check_branch
      %112 = sbr.rel (0) target = $region41
    $region40: #{tpu_custom_call.1} parent=1 // pred_region
      %s114 = ssub.s32 16, 16
      %115 = vsyncadd [#allocation16], %s114
      %s117 = sshll.u32 [#allocation15], 4
      %s118 = int_to_ptr.vmem [resolvable:$true] %s117
      %120 = dma.hbm_to_vmem [thread:$0]  %s9, 16, %s118, [#allocation16]
    $region41: #{tpu_custom_call.1} parent=1 // pred_fallthru
      _
    // Predicated region
    $region42: #{tpu_custom_call.1} parent=1 // pred_check
      _
    $region43: #{tpu_custom_call.1} parent=1 // pred_check_branch
      %122 = sbr.rel (0) target = $region45
    $region44: #{tpu_custom_call.1} parent=1 // pred_region
      _
    $region45: #{tpu_custom_call.1} parent=1 // pred_fallthru
      _
    // Predicated region
    $region46: #{tpu_custom_call.1} parent=1 // pred_check
      _
    $region47: #{tpu_custom_call.1} parent=1 // pred_check_branch
      %124 = sbr.rel (0) target = $region49
    $region48: #{tpu_custom_call.1} parent=1 // pred_region
      _
    $region49: #{tpu_custom_call.1} parent=1 // pred_fallthru
      _
    // Predicated region
    $region50: #{tpu_custom_call.1} parent=1 // pred_check
      _
    $region51: #{tpu_custom_call.1} parent=1 // pred_check_branch
      %126 = sbr.rel (0) target = $region53
    $region52: #{tpu_custom_call.1} parent=1 // pred_region
      %127 = dma.done [#allocation4], 256
    $region53: #{tpu_custom_call.1} parent=1 // pred_fallthru
      _
    // Predicated region
    $region54: #{tpu_custom_call.1} parent=1 // pred_check
      _
    $region55: #{tpu_custom_call.1} parent=1 // pred_check_branch
      %129 = sbr.rel (0) target = $region57
    $region56: #{tpu_custom_call.1} parent=1 // pred_region
      %130 = dma.done [#allocation7], 256
    $region57: #{tpu_custom_call.1} parent=1 // pred_fallthru
      _
    // Predicated region
    $region58: #{tpu_custom_call.1} parent=1 // pred_check
      _
    $region59: #{tpu_custom_call.1} parent=1 // pred_check_branch
      %132 = sbr.rel (0) target = $region61
    $region60: #{tpu_custom_call.1} parent=1 // pred_region
      %133 = dma.done [#allocation7], 256
    $region61: #{tpu_custom_call.1} parent=1 // pred_fallthru
      _
    // Predicated region
    $region62: #{tpu_custom_call.1} parent=1 // pred_check
      _
    $region63: #{tpu_custom_call.1} parent=1 // pred_check_branch
      %135 = sbr.rel (0) target = $region65
    $region64: #{tpu_custom_call.1} parent=1 // pred_region
      %136 = dma.done [#allocation10], 16
    $region65: #{tpu_custom_call.1} parent=1 // pred_fallthru
      _
    // Predicated region
    $region66: #{tpu_custom_call.1} parent=1 // pred_check
      _
    $region67: #{tpu_custom_call.1} parent=1 // pred_check_branch
      %138 = sbr.rel (0) target = $region69
    $region68: #{tpu_custom_call.1} parent=1 // pred_region
      %139 = dma.done [#allocation10], 512
    $region69: #{tpu_custom_call.1} parent=1 // pred_fallthru
      _
    // Predicated region
    $region70: #{tpu_custom_call.1} parent=1 // pred_check
      _
    $region71: #{tpu_custom_call.1} parent=1 // pred_check_branch
      %141 = sbr.rel (0) target = $region73
    $region72: #{tpu_custom_call.1} parent=1 // pred_region
      %142 = dma.done [#allocation13], 512
    $region73: #{tpu_custom_call.1} parent=1 // pred_fallthru
      _
    // Predicated region
    $region74: #{tpu_custom_call.1} parent=1 // pred_check
      _
    $region75: #{tpu_custom_call.1} parent=1 // pred_check_branch
      %144 = sbr.rel (0) target = $region77
    $region76: #{tpu_custom_call.1} parent=1 // pred_region
      %145 = dma.done [#allocation13], 16
    $region77: #{tpu_custom_call.1} parent=1 // pred_fallthru
      _
    // Predicated region
    $region78: #{tpu_custom_call.1} parent=1 // pred_check
      _
    $region79: #{tpu_custom_call.1} parent=1 // pred_check_branch
      %147 = sbr.rel (0) target = $region81
    $region80: #{tpu_custom_call.1} parent=1 // pred_region
      %148 = dma.done [#allocation16], 16
    $region81: #{tpu_custom_call.1} parent=1 // pred_fallthru
      _
    %v149 = vld [vmem:[%s0] sm:$0xff]
    %v150 = vld [vmem:[%s0 + $0x8] sm:$0xff]
    %v151 = vld [vmem:[%s0 + $0x10] sm:$0xff]
    %v152 = vld [vmem:[%s0 + $0x18] sm:$0xff]
    %v153 = vld [vmem:[%s0 + $0x20] sm:$0xff]
    %v154 = vld [vmem:[%s0 + $0x28] sm:$0xff]
    %v155 = vld [vmem:[%s0 + $0x30] sm:$0xff]
    %v156 = vld [vmem:[%s0 + $0x38] sm:$0xff]
    %v157 = vld [vmem:[#allocation8] sm:$0xff]
    %v158 = vld [vmem:[#allocation8 + $0x8] sm:$0xff]
    %v159 = vld [vmem:[#allocation9] sm:$0x1]
    %v161 = vlaneseq
    %v162 = vshrl.u32 %v161, 7
    %v163 = vsub.s32 0, %v162
    %v164 = vrot.slane %v159, %v163
    %vm166 = vcmask 130048
    %v168 = vsel %vm166, %v149, 0
    %v171 = vsel %vm166, %v150, 0
    %v174 = vsel %vm166, %v151, 0
    %v177 = vsel %vm166, %v152, 0
    %v180 = vsel %vm166, %v153, 0
    %v183 = vsel %vm166, %v154, 0
    %v186 = vsel %vm166, %v155, 0
    %v189 = vsel %vm166, %v156, 0
    %191 = vmatprep.subr.mxu0 0.0
    %192 = vmatpush1.msra.mxu0 0.0
    %193 = vmatprep.subr.mxu0 0.0
    %194 = vmatpush1.msra.mxu0 0.0
    %195 = vmatprep.subr.mxu0 0.0
    %196 = vmatpush1.msra.mxu0 0.0
    %197 = vmatprep.subr.mxu0 0.0
    %198 = vmatpush1.msra.mxu0 0.0
    %199 = vmatprep.subr.mxu0 0.0
    %200 = vmatpush1.msra.mxu0 0.0
    %201 = vmatprep.subr.mxu0 0.0
    %202 = vmatpush1.msra.mxu0 0.0
    %203 = vmatprep.subr.mxu0 0.0
    %204 = vmatpush1.msra.mxu0 0.0
    %205 = vmatprep.subr.mxu0 0.0
    %206 = vmatpush1.msra.mxu0 0.0
    %207 = vmatprep.subr.mxu0 0.0
    %208 = vmatpush1.msra.mxu0 0.0
    %209 = vmatprep.subr.mxu0 0.0
    %210 = vmatpush1.msra.mxu0 0.0
    %211 = vmatprep.subr.mxu0 0.0
    %212 = vmatpush1.msra.mxu0 0.0
    %213 = vmatprep.subr.mxu0 0.0
    %214 = vmatpush1.msra.mxu0 0.0
    %215 = vmatprep.subr.mxu0 0.0
    %216 = vmatpush1.msra.mxu0 0.0
    %217 = vmatprep.subr.mxu0 0.0
    %218 = vmatpush1.msra.mxu0 0.0
    %219 = vmatprep.subr.mxu0 0.0
    %220 = vmatpush1.msra.mxu0 %v158
    %221 = vmatprep.subr.mxu0 0.0
    %222 = vmatpush1.msra.mxu0 %v157
    %223 = vmatprep.subr.mxu0 0.0
    %224 = vmatpush2.msra.mxu0 0.0
    %225 = vmatprep.subr.mxu0 0.0
    %226 = vmatpush2.msra.mxu0 0.0
    %227 = vmatprep.subr.mxu0 0.0
    %228 = vmatpush2.msra.mxu0 0.0
    %229 = vmatprep.subr.mxu0 0.0
    %230 = vmatpush2.msra.mxu0 0.0
    %231 = vmatprep.subr.mxu0 0.0
    %232 = vmatpush2.msra.mxu0 0.0
    %233 = vmatprep.subr.mxu0 0.0
    %234 = vmatpush2.msra.mxu0 0.0
    %235 = vmatprep.subr.mxu0 0.0
    %236 = vmatpush2.msra.mxu0 0.0
    %237 = vmatprep.subr.mxu0 0.0
    %238 = vmatpush2.msra.mxu0 0.0
    %239 = vmatprep.subr.mxu0 0.0
    %240 = vmatpush2.msra.mxu0 0.0
    %241 = vmatprep.subr.mxu0 0.0
    %242 = vmatpush2.msra.mxu0 0.0
    %243 = vmatprep.subr.mxu0 0.0
    %244 = vmatpush2.msra.mxu0 0.0
    %245 = vmatprep.subr.mxu0 0.0
    %246 = vmatpush2.msra.mxu0 0.0
    %247 = vmatprep.subr.mxu0 0.0
    %248 = vmatpush2.msra.mxu0 0.0
    %249 = vmatprep.subr.mxu0 0.0
    %250 = vmatpush2.msra.mxu0 0.0
    %251 = vmatprep.subr.mxu0 0.0
    %252 = vmatpush2.msra.mxu0 0.0
    %253 = vmatprep.subr.mxu0 0.0
    %254 = vmatpush2.msra.mxu0 0.0
    %255 = vmatprep.mubr.f32.mxu0 0.0
    %256 = vmatmul.mubr.f32.gmra.mxu0 %v168
    %v257 = vpop.f32.mrf.mxu0
    %v258 = vadd.f32 %v164, %v257
    %v259 = vpop.f32.mrf.mxu0
    %260 = vmatprep.mubr.f32.mxu0 0.0
    %261 = vmatmul.mubr.f32.gmra.mxu0 %v171
    %v262 = vpop.f32.mrf.mxu0
    %v263 = vadd.f32 %v164, %v262
    %v264 = vpop.f32.mrf.mxu0
    %265 = vmatprep.mubr.f32.mxu0 0.0
    %266 = vmatmul.mubr.f32.gmra.mxu0 %v174
    %v267 = vpop.f32.mrf.mxu0
    %v268 = vadd.f32 %v164, %v267
    %v269 = vpop.f32.mrf.mxu0
    %270 = vmatprep.mubr.f32.mxu0 0.0
    %271 = vmatmul.mubr.f32.gmra.mxu0 %v177
    %v272 = vpop.f32.mrf.mxu0
    %v273 = vadd.f32 %v164, %v272
    %v274 = vpop.f32.mrf.mxu0
    %275 = vmatprep.mubr.f32.mxu0 0.0
    %276 = vmatmul.mubr.f32.gmra.mxu0 %v180
    %v277 = vpop.f32.mrf.mxu0
    %v278 = vadd.f32 %v164, %v277
    %v279 = vpop.f32.mrf.mxu0
    %280 = vmatprep.mubr.f32.mxu0 0.0
    %281 = vmatmul.mubr.f32.gmra.mxu0 %v183
    %v282 = vpop.f32.mrf.mxu0
    %v283 = vadd.f32 %v164, %v282
    %v284 = vpop.f32.mrf.mxu0
    %285 = vmatprep.mubr.f32.mxu0 0.0
    %286 = vmatmul.mubr.f32.gmra.mxu0 %v186
    %v287 = vpop.f32.mrf.mxu0
    %v288 = vadd.f32 %v164, %v287
    %v289 = vpop.f32.mrf.mxu0
    %290 = vmatprep.mubr.f32.mxu0 0.0
    %291 = vmatmul.mubr.f32.gmra.mxu0 %v189
    %v292 = vpop.f32.mrf.mxu0
    %v293 = vadd.f32 %v164, %v292
    %v294 = vpop.f32.mrf.mxu0
    %295 = vdwg.mxu0
    %vm296 = vcmp.gt.f32.partialorder %v258, 0.0
    %vm297 = vcmp.gt.f32.partialorder %v263, 0.0
    %vm298 = vcmp.gt.f32.partialorder %v268, 0.0
    %vm299 = vcmp.gt.f32.partialorder %v273, 0.0
    %vm300 = vcmp.gt.f32.partialorder %v278, 0.0
    %vm301 = vcmp.gt.f32.partialorder %v283, 0.0
    %vm302 = vcmp.gt.f32.partialorder %v288, 0.0
    %vm303 = vcmp.gt.f32.partialorder %v293, 0.0
    %v304 = vmul.f32 %v258, 0.01
    %v305 = vmul.f32 %v263, 0.01
    %v306 = vmul.f32 %v268, 0.01
    %v307 = vmul.f32 %v273, 0.01
    %v308 = vmul.f32 %v278, 0.01
    %v309 = vmul.f32 %v283, 0.01
    %v310 = vmul.f32 %v288, 0.01
    %v311 = vmul.f32 %v293, 0.01
    %v312 = vsel %vm296, %v258, %v304
    %v313 = vsel %vm297, %v263, %v305
    %v314 = vsel %vm298, %v268, %v306
    %v315 = vsel %vm299, %v273, %v307
    %v316 = vsel %vm300, %v278, %v308
    %v317 = vsel %vm301, %v283, %v309
    %v318 = vsel %vm302, %v288, %v310
    %v319 = vsel %vm303, %v293, %v311
    %v320 = vtanh.pop %v258
    %v321 = vtanh.pop %v263
    %v322 = vtanh.pop %v268
    %v323 = vtanh.pop %v273
    %v324 = vtanh.pop %v278
    %v325 = vtanh.pop %v283
    %v326 = vtanh.pop %v288
    %v327 = vtanh.pop %v293
    %v328 = vld [vmem:[#allocation11] sm:$0xff]
    %v329 = vld [vmem:[#allocation11 + $0x8] sm:$0xff]
    %v330 = vld [vmem:[#allocation11 + $0x10] sm:$0xff]
    %v331 = vld [vmem:[#allocation11 + $0x18] sm:$0xff]
    %v332 = vld [vmem:[#allocation14] sm:$0x1]
    %v334 = vlaneseq
    %v335 = vshrl.u32 %v334, 7
    %v336 = vsub.s32 0, %v335
    %v337 = vrot.slane %v332, %v336
    %vm339 = vcmask 261120
    %v341 = vsel %vm339, %v312, 0
    %v344 = vsel %vm339, %v313, 0
    %v347 = vsel %vm339, %v314, 0
    %v350 = vsel %vm339, %v315, 0
    %v353 = vsel %vm339, %v316, 0
    %v356 = vsel %vm339, %v317, 0
    %v359 = vsel %vm339, %v318, 0
    %v362 = vsel %vm339, %v319, 0
    %364 = vmatprep.subr.mxu0 0.0
    %365 = vmatpush1.msra.mxu0 0.0
    %366 = vmatprep.subr.mxu0 0.0
    %367 = vmatpush1.msra.mxu0 0.0
    %368 = vmatprep.subr.mxu0 0.0
    %369 = vmatpush1.msra.mxu0 0.0
    %370 = vmatprep.subr.mxu0 0.0
    %371 = vmatpush1.msra.mxu0 0.0
    %372 = vmatprep.subr.mxu0 0.0
    %373 = vmatpush1.msra.mxu0 0.0
    %374 = vmatprep.subr.mxu0 0.0
    %375 = vmatpush1.msra.mxu0 0.0
    %376 = vmatprep.subr.mxu0 0.0
    %377 = vmatpush1.msra.mxu0 0.0
    %378 = vmatprep.subr.mxu0 0.0
    %379 = vmatpush1.msra.mxu0 0.0
    %380 = vmatprep.subr.mxu0 0.0
    %381 = vmatpush1.msra.mxu0 0.0
    %382 = vmatprep.subr.mxu0 0.0
    %383 = vmatpush1.msra.mxu0 0.0
    %384 = vmatprep.subr.mxu0 0.0
    %385 = vmatpush1.msra.mxu0 0.0
    %386 = vmatprep.subr.mxu0 0.0
    %387 = vmatpush1.msra.mxu0 0.0
    %388 = vmatprep.subr.mxu0 0.0
    %389 = vmatpush1.msra.mxu0 %v331
    %390 = vmatprep.subr.mxu0 0.0
    %391 = vmatpush1.msra.mxu0 %v330
    %392 = vmatprep.subr.mxu0 0.0
    %393 = vmatpush1.msra.mxu0 %v329
    %394 = vmatprep.subr.mxu0 0.0
    %395 = vmatpush1.msra.mxu0 %v328
    %396 = vmatprep.subr.mxu0 0.0
    %397 = vmatpush2.msra.mxu0 0.0
    %398 = vmatprep.subr.mxu0 0.0
    %399 = vmatpush2.msra.mxu0 0.0
    %400 = vmatprep.subr.mxu0 0.0
    %401 = vmatpush2.msra.mxu0 0.0
    %402 = vmatprep.subr.mxu0 0.0
    %403 = vmatpush2.msra.mxu0 0.0
    %404 = vmatprep.subr.mxu0 0.0
    %405 = vmatpush2.msra.mxu0 0.0
    %406 = vmatprep.subr.mxu0 0.0
    %407 = vmatpush2.msra.mxu0 0.0
    %408 = vmatprep.subr.mxu0 0.0
    %409 = vmatpush2.msra.mxu0 0.0
    %410 = vmatprep.subr.mxu0 0.0
    %411 = vmatpush2.msra.mxu0 0.0
    %412 = vmatprep.subr.mxu0 0.0
    %413 = vmatpush2.msra.mxu0 0.0
    %414 = vmatprep.subr.mxu0 0.0
    %415 = vmatpush2.msra.mxu0 0.0
    %416 = vmatprep.subr.mxu0 0.0
    %417 = vmatpush2.msra.mxu0 0.0
    %418 = vmatprep.subr.mxu0 0.0
    %419 = vmatpush2.msra.mxu0 0.0
    %420 = vmatprep.subr.mxu0 0.0
    %421 = vmatpush2.msra.mxu0 0.0
    %422 = vmatprep.subr.mxu0 0.0
    %423 = vmatpush2.msra.mxu0 0.0
    %424 = vmatprep.subr.mxu0 0.0
    %425 = vmatpush2.msra.mxu0 0.0
    %426 = vmatprep.subr.mxu0 0.0
    %427 = vmatpush2.msra.mxu0 0.0
    %428 = vmatprep.mubr.f32.mxu0 0.0
    %429 = vmatmul.mubr.f32.gmra.mxu0 %v341
    %v430 = vpop.f32.mrf.mxu0
    %v431 = vadd.f32 %v337, %v430
    %v432 = vpop.f32.mrf.mxu0
    %433 = vmatprep.mubr.f32.mxu0 0.0
    %434 = vmatmul.mubr.f32.gmra.mxu0 %v344
    %v435 = vpop.f32.mrf.mxu0
    %v436 = vadd.f32 %v337, %v435
    %v437 = vpop.f32.mrf.mxu0
    %438 = vmatprep.mubr.f32.mxu0 0.0
    %439 = vmatmul.mubr.f32.gmra.mxu0 %v347
    %v440 = vpop.f32.mrf.mxu0
    %v441 = vadd.f32 %v337, %v440
    %v442 = vpop.f32.mrf.mxu0
    %443 = vmatprep.mubr.f32.mxu0 0.0
    %444 = vmatmul.mubr.f32.gmra.mxu0 %v350
    %v445 = vpop.f32.mrf.mxu0
    %v446 = vadd.f32 %v337, %v445
    %v447 = vpop.f32.mrf.mxu0
    %448 = vmatprep.mubr.f32.mxu0 0.0
    %449 = vmatmul.mubr.f32.gmra.mxu0 %v353
    %v450 = vpop.f32.mrf.mxu0
    %v451 = vadd.f32 %v337, %v450
    %v452 = vpop.f32.mrf.mxu0
    %453 = vmatprep.mubr.f32.mxu0 0.0
    %454 = vmatmul.mubr.f32.gmra.mxu0 %v356
    %v455 = vpop.f32.mrf.mxu0
    %v456 = vadd.f32 %v337, %v455
    %v457 = vpop.f32.mrf.mxu0
    %458 = vmatprep.mubr.f32.mxu0 0.0
    %459 = vmatmul.mubr.f32.gmra.mxu0 %v359
    %v460 = vpop.f32.mrf.mxu0
    %v461 = vadd.f32 %v337, %v460
    %v462 = vpop.f32.mrf.mxu0
    %463 = vmatprep.mubr.f32.mxu0 0.0
    %464 = vmatmul.mubr.f32.gmra.mxu0 %v362
    %v465 = vpop.f32.mrf.mxu0
    %v466 = vadd.f32 %v337, %v465
    %v467 = vpop.f32.mrf.mxu0
    %468 = vdwg.mxu0
    %v469 = vld [vmem:[#allocation12] sm:$0xff]
    %v470 = vld [vmem:[#allocation12 + $0x8] sm:$0xff]
    %v471 = vld [vmem:[#allocation12 + $0x10] sm:$0xff]
    %v472 = vld [vmem:[#allocation12 + $0x18] sm:$0xff]
    %v473 = vld [vmem:[%s8] sm:$0xff]
    %v474 = vld [vmem:[%s8 + $0x8] sm:$0xff]
    %v475 = vld [vmem:[%s8 + $0x10] sm:$0xff]
    %v476 = vld [vmem:[%s8 + $0x18] sm:$0xff]
    %v477 = vld [vmem:[%s8 + $0x20] sm:$0xff]
    %v478 = vld [vmem:[%s8 + $0x28] sm:$0xff]
    %v479 = vld [vmem:[%s8 + $0x30] sm:$0xff]
    %v480 = vld [vmem:[%s8 + $0x38] sm:$0xff]
    %v481 = vld [vmem:[#allocation15] sm:$0x1]
    %v483 = vlaneseq
    %v484 = vshrl.u32 %v483, 7
    %v485 = vsub.s32 0, %v484
    %v486 = vrot.slane %v481, %v485
    %v488 = vld [vmem:[#allocation3] sm:$0xff]
    %v489 = vld [vmem:[#allocation6] sm:$0xff]
    %s490 = scalar_lea.vmem [#allocation3], 8
    %v491 = vld [vmem:[%s490] sm:$0xff]
    %s492 = scalar_lea.vmem [#allocation6], 8
    %v493 = vld [vmem:[%s492] sm:$0xff]
    %v495 = vsel %vm339, %v488, 0
    %497 = vmatprep.subr.mxu0 0.0
    %498 = vmatpush1.msra.mxu0 0.0
    %499 = vmatprep.subr.mxu0 0.0
    %500 = vmatpush1.msra.mxu0 0.0
    %501 = vmatprep.subr.mxu0 0.0
    %502 = vmatpush1.msra.mxu0 0.0
    %503 = vmatprep.subr.mxu0 0.0
    %504 = vmatpush1.msra.mxu0 0.0
    %505 = vmatprep.subr.mxu0 0.0
    %506 = vmatpush1.msra.mxu0 0.0
    %507 = vmatprep.subr.mxu0 0.0
    %508 = vmatpush1.msra.mxu0 0.0
    %509 = vmatprep.subr.mxu0 0.0
    %510 = vmatpush1.msra.mxu0 0.0
    %511 = vmatprep.subr.mxu0 0.0
    %512 = vmatpush1.msra.mxu0 0.0
    %513 = vmatprep.subr.mxu0 0.0
    %514 = vmatpush1.msra.mxu0 0.0
    %515 = vmatprep.subr.mxu0 0.0
    %516 = vmatpush1.msra.mxu0 0.0
    %517 = vmatprep.subr.mxu0 0.0
    %518 = vmatpush1.msra.mxu0 0.0
    %519 = vmatprep.subr.mxu0 0.0
    %520 = vmatpush1.msra.mxu0 0.0
    %521 = vmatprep.subr.mxu0 0.0
    %522 = vmatpush1.msra.mxu0 %v472
    %523 = vmatprep.subr.mxu0 0.0
    %524 = vmatpush1.msra.mxu0 %v471
    %525 = vmatprep.subr.mxu0 0.0
    %526 = vmatpush1.msra.mxu0 %v470
    %527 = vmatprep.subr.mxu0 0.0
    %528 = vmatpush1.msra.mxu0 %v469
    %529 = vmatprep.subr.mxu0 0.0
    %530 = vmatpush2.msra.mxu0 0.0
    %531 = vmatprep.subr.mxu0 0.0
    %532 = vmatpush2.msra.mxu0 0.0
    %533 = vmatprep.subr.mxu0 0.0
    %534 = vmatpush2.msra.mxu0 0.0
    %535 = vmatprep.subr.mxu0 0.0
    %536 = vmatpush2.msra.mxu0 0.0
    %537 = vmatprep.subr.mxu0 0.0
    %538 = vmatpush2.msra.mxu0 0.0
    %539 = vmatprep.subr.mxu0 0.0
    %540 = vmatpush2.msra.mxu0 0.0
    %541 = vmatprep.subr.mxu0 0.0
    %542 = vmatpush2.msra.mxu0 0.0
    %543 = vmatprep.subr.mxu0 0.0
    %544 = vmatpush2.msra.mxu0 0.0
    %545 = vmatprep.subr.mxu0 0.0
    %546 = vmatpush2.msra.mxu0 0.0
    %547 = vmatprep.subr.mxu0 0.0
    %548 = vmatpush2.msra.mxu0 0.0
    %549 = vmatprep.subr.mxu0 0.0
    %550 = vmatpush2.msra.mxu0 0.0
    %551 = vmatprep.subr.mxu0 0.0
    %552 = vmatpush2.msra.mxu0 0.0
    %553 = vmatprep.subr.mxu0 0.0
    %554 = vmatpush2.msra.mxu0 0.0
    %555 = vmatprep.subr.mxu0 0.0
    %556 = vmatpush2.msra.mxu0 0.0
    %557 = vmatprep.subr.mxu0 0.0
    %558 = vmatpush2.msra.mxu0 0.0
    %559 = vmatprep.subr.mxu0 0.0
    %560 = vmatpush2.msra.mxu0 0.0
    %561 = vmatprep.mubr.f32.mxu0 0.0
    %562 = vmatmul.mubr.f32.gmra.mxu0 %v495
    %v563 = vpop.f32.mrf.mxu0
    %v564 = vadd.f32 0.0, %v563
    %v565 = vpop.f32.mrf.mxu0
    %566 = vdwg.mxu0
    %v567 = vadd.f32 %v431, %v564
    %v568 = vxor.u32 %v567, 2147483648
    %v569 = vmul.f32 %v568, 1.442695
    %v570 = vpow.pop %v569
    %v571 = vadd.f32 %v570, 1.0
    %v572 = vrcp.pop %v571
    %v573 = vmul.f32 1.0, %v572
    %v574 = vtanh.pop %v567
    %576 = vrot.lane.b32.xlu0 %v489, 32
    %v577 = vpop.permute.xlu0 %576
    %v579 = vmul.f32 %v573, %v577
    %581 = vrot.lane.b32.xlu0 %v574, 64
    %v582 = vpop.permute.xlu0 %581
    %v584 = vmul.f32 %v573, %v582
    %586 = vrot.lane.b32.xlu0 %v584, 32
    %v587 = vpop.permute.xlu0 %586
    %v589 = vadd.f32 %v579, %v587
    %v590 = vtanh.pop %v589
    %592 = vrot.lane.b32.xlu0 %v590, 64
    %v593 = vpop.permute.xlu0 %592
    %v595 = vmul.f32 %v573, %v593
    %597 = vrot.lane.b32.xlu0 %v595, 32
    %v598 = vpop.permute.xlu0 %597
    %601 = vrot.lane.b32.xlu0 %v491, 32
    %v602 = vpop.permute.xlu0 %601
    %v604 = vsel %vm339, %v598, %v602
    %vm605 = vcmask 523264
    %v607 = vsel %vm605, %v604, 0
    %609 = vmatprep.subr.mxu0 0.0
    %610 = vmatpush1.msra.mxu0 0.0
    %611 = vmatprep.subr.mxu0 0.0
    %612 = vmatpush1.msra.mxu0 0.0
    %613 = vmatprep.subr.mxu0 0.0
    %614 = vmatpush1.msra.mxu0 0.0
    %615 = vmatprep.subr.mxu0 0.0
    %616 = vmatpush1.msra.mxu0 0.0
    %617 = vmatprep.subr.mxu0 0.0
    %618 = vmatpush1.msra.mxu0 0.0
    %619 = vmatprep.subr.mxu0 0.0
    %620 = vmatpush1.msra.mxu0 0.0
    %621 = vmatprep.subr.mxu0 0.0
    %622 = vmatpush1.msra.mxu0 0.0
    %623 = vmatprep.subr.mxu0 0.0
    %624 = vmatpush1.msra.mxu0 0.0
    %625 = vmatprep.subr.mxu0 0.0
    %626 = vmatpush1.msra.mxu0 %v480
    %627 = vmatprep.subr.mxu0 0.0
    %628 = vmatpush1.msra.mxu0 %v479
    %629 = vmatprep.subr.mxu0 0.0
    %630 = vmatpush1.msra.mxu0 %v478
    %631 = vmatprep.subr.mxu0 0.0
    %632 = vmatpush1.msra.mxu0 %v477
    %633 = vmatprep.subr.mxu0 0.0
    %634 = vmatpush1.msra.mxu0 %v476
    %635 = vmatprep.subr.mxu0 0.0
    %636 = vmatpush1.msra.mxu0 %v475
    %637 = vmatprep.subr.mxu0 0.0
    %638 = vmatpush1.msra.mxu0 %v474
    %639 = vmatprep.subr.mxu0 0.0
    %640 = vmatpush1.msra.mxu0 %v473
    %641 = vmatprep.subr.mxu0 0.0
    %642 = vmatpush2.msra.mxu0 0.0
    %643 = vmatprep.subr.mxu0 0.0
    %644 = vmatpush2.msra.mxu0 0.0
    %645 = vmatprep.subr.mxu0 0.0
    %646 = vmatpush2.msra.mxu0 0.0
    %647 = vmatprep.subr.mxu0 0.0
    %648 = vmatpush2.msra.mxu0 0.0
    %649 = vmatprep.subr.mxu0 0.0
    %650 = vmatpush2.msra.mxu0 0.0
    %651 = vmatprep.subr.mxu0 0.0
    %652 = vmatpush2.msra.mxu0 0.0
    %653 = vmatprep.subr.mxu0 0.0
    %654 = vmatpush2.msra.mxu0 0.0
    %655 = vmatprep.subr.mxu0 0.0
    %656 = vmatpush2.msra.mxu0 0.0
    %657 = vmatprep.subr.mxu0 0.0
    %658 = vmatpush2.msra.mxu0 0.0
    %659 = vmatprep.subr.mxu0 0.0
    %660 = vmatpush2.msra.mxu0 0.0
    %661 = vmatprep.subr.mxu0 0.0
    %662 = vmatpush2.msra.mxu0 0.0
    %663 = vmatprep.subr.mxu0 0.0
    %664 = vmatpush2.msra.mxu0 0.0
    %665 = vmatprep.subr.mxu0 0.0
    %666 = vmatpush2.msra.mxu0 0.0
    %667 = vmatprep.subr.mxu0 0.0
    %668 = vmatpush2.msra.mxu0 0.0
    %669 = vmatprep.subr.mxu0 0.0
    %670 = vmatpush2.msra.mxu0 0.0
    %671 = vmatprep.subr.mxu0 0.0
    %672 = vmatpush2.msra.mxu0 0.0
    %673 = vmatprep.mubr.f32.mxu0 0.0
    %674 = vmatmul.mubr.f32.gmra.mxu0 %v607
    %v675 = vpop.f32.mrf.mxu0
    %v676 = vadd.f32 %v486, %v675
    %v677 = vpop.f32.mrf.mxu0
    %678 = vdwg.mxu0
    %v679 = vxor.u32 %v676, 2147483648
    %v680 = vmul.f32 %v679, 1.442695
    %v681 = vpow.pop %v680
    %v682 = vadd.f32 %v681, 1.0
    %v683 = vrcp.pop %v682
    %v684 = vmul.f32 1.0, %v683
    %v685 = vtanh.pop %v676
    %687 = vrot.lane.b32.xlu0 %v493, 32
    %v688 = vpop.permute.xlu0 %687
    %v690 = vmul.f32 %v684, %v688
    %692 = vrot.lane.b32.xlu0 %v685, 64
    %v693 = vpop.permute.xlu0 %692
    %v695 = vmul.f32 %v684, %v693
    %697 = vrot.lane.b32.xlu0 %v695, 32
    %v698 = vpop.permute.xlu0 %697
    %v700 = vadd.f32 %v690, %v698
    %v701 = vtanh.pop %v700
    %703 = vrot.lane.b32.xlu0 %v701, 64
    %v704 = vpop.permute.xlu0 %703
    %v706 = vmul.f32 %v684, %v704
    %708 = vrot.lane.b32.xlu0 %v706, 32
    %v709 = vpop.permute.xlu0 %708
    %711 = vst.msk [vmem:[#allocation2] sm:$0xff] %vm339, %v709
    %v712 = vsel %vm339, %v598, 0
    %714 = vmatprep.subr.mxu0 0.0
    %715 = vmatpush1.msra.mxu0 0.0
    %716 = vmatprep.subr.mxu0 0.0
    %717 = vmatpush1.msra.mxu0 0.0
    %718 = vmatprep.subr.mxu0 0.0
    %719 = vmatpush1.msra.mxu0 0.0
    %720 = vmatprep.subr.mxu0 0.0
    %721 = vmatpush1.msra.mxu0 0.0
    %722 = vmatprep.subr.mxu0 0.0
    %723 = vmatpush1.msra.mxu0 0.0
    %724 = vmatprep.subr.mxu0 0.0
    %725 = vmatpush1.msra.mxu0 0.0
    %726 = vmatprep.subr.mxu0 0.0
    %727 = vmatpush1.msra.mxu0 0.0
    %728 = vmatprep.subr.mxu0 0.0
    %729 = vmatpush1.msra.mxu0 0.0
    %730 = vmatprep.subr.mxu0 0.0
    %731 = vmatpush1.msra.mxu0 0.0
    %732 = vmatprep.subr.mxu0 0.0
    %733 = vmatpush1.msra.mxu0 0.0
    %734 = vmatprep.subr.mxu0 0.0
    %735 = vmatpush1.msra.mxu0 0.0
    %736 = vmatprep.subr.mxu0 0.0
    %737 = vmatpush1.msra.mxu0 0.0
    %738 = vmatprep.subr.mxu0 0.0
    %739 = vmatpush1.msra.mxu0 %v472
    %740 = vmatprep.subr.mxu0 0.0
    %741 = vmatpush1.msra.mxu0 %v471
    %742 = vmatprep.subr.mxu0 0.0
    %743 = vmatpush1.msra.mxu0 %v470
    %744 = vmatprep.subr.mxu0 0.0
    %745 = vmatpush1.msra.mxu0 %v469
    %746 = vmatprep.subr.mxu0 0.0
    %747 = vmatpush2.msra.mxu0 0.0
    %748 = vmatprep.subr.mxu0 0.0
    %749 = vmatpush2.msra.mxu0 0.0
    %750 = vmatprep.subr.mxu0 0.0
    %751 = vmatpush2.msra.mxu0 0.0
    %752 = vmatprep.subr.mxu0 0.0
    %753 = vmatpush2.msra.mxu0 0.0
    %754 = vmatprep.subr.mxu0 0.0
    %755 = vmatpush2.msra.mxu0 0.0
    %756 = vmatprep.subr.mxu0 0.0
    %757 = vmatpush2.msra.mxu0 0.0
    %758 = vmatprep.subr.mxu0 0.0
    %759 = vmatpush2.msra.mxu0 0.0
    %760 = vmatprep.subr.mxu0 0.0
    %761 = vmatpush2.msra.mxu0 0.0
    %762 = vmatprep.subr.mxu0 0.0
    %763 = vmatpush2.msra.mxu0 0.0
    %764 = vmatprep.subr.mxu0 0.0
    %765 = vmatpush2.msra.mxu0 0.0
    %766 = vmatprep.subr.mxu0 0.0
    %767 = vmatpush2.msra.mxu0 0.0
    %768 = vmatprep.subr.mxu0 0.0
    %769 = vmatpush2.msra.mxu0 0.0
    %770 = vmatprep.subr.mxu0 0.0
    %771 = vmatpush2.msra.mxu0 0.0
    %772 = vmatprep.subr.mxu0 0.0
    %773 = vmatpush2.msra.mxu0 0.0
    %774 = vmatprep.subr.mxu0 0.0
    %775 = vmatpush2.msra.mxu0 0.0
    %776 = vmatprep.subr.mxu0 0.0
    %777 = vmatpush2.msra.mxu0 0.0
    %778 = vmatprep.mubr.f32.mxu0 0.0
    %779 = vmatmul.mubr.f32.gmra.mxu0 %v712
    %v780 = vpop.f32.mrf.mxu0
    %v781 = vadd.f32 0.0, %v780
    %v782 = vpop.f32.mrf.mxu0
    %783 = vdwg.mxu0
    %v784 = vadd.f32 %v436, %v781
    %v785 = vxor.u32 %v784, 2147483648
    %v786 = vmul.f32 %v785, 1.442695
    %v787 = vpow.pop %v786
    %v788 = vadd.f32 %v787, 1.0
    %v789 = vrcp.pop %v788
    %v790 = vmul.f32 1.0, %v789
    %v791 = vtanh.pop %v784
    %v792 = vmul.f32 %v790, %v589
    %794 = vrot.lane.b32.xlu0 %v791, 64
    %v795 = vpop.permute.xlu0 %794
    %v797 = vmul.f32 %v790, %v795
    %799 = vrot.lane.b32.xlu0 %v797, 32
    %v800 = vpop.permute.xlu0 %799
    %v802 = vadd.f32 %v792, %v800
    %v803 = vtanh.pop %v802
    %805 = vrot.lane.b32.xlu0 %v803, 64
    %v806 = vpop.permute.xlu0 %805
    %v808 = vmul.f32 %v790, %v806
    %810 = vrot.lane.b32.xlu0 %v808, 32
    %v811 = vpop.permute.xlu0 %810
    %813 = vrot.lane.b32.xlu0 %v706, 64
    %v814 = vpop.permute.xlu0 %813
    %v816 = vsel %vm339, %v811, %v814
    %v818 = vsel %vm605, %v816, 0
    %820 = vmatprep.subr.mxu0 0.0
    %821 = vmatpush1.msra.mxu0 0.0
    %822 = vmatprep.subr.mxu0 0.0
    %823 = vmatpush1.msra.mxu0 0.0
    %824 = vmatprep.subr.mxu0 0.0
    %825 = vmatpush1.msra.mxu0 0.0
    %826 = vmatprep.subr.mxu0 0.0
    %827 = vmatpush1.msra.mxu0 0.0
    %828 = vmatprep.subr.mxu0 0.0
    %829 = vmatpush1.msra.mxu0 0.0
    %830 = vmatprep.subr.mxu0 0.0
    %831 = vmatpush1.msra.mxu0 0.0
    %832 = vmatprep.subr.mxu0 0.0
    %833 = vmatpush1.msra.mxu0 0.0
    %834 = vmatprep.subr.mxu0 0.0
    %835 = vmatpush1.msra.mxu0 0.0
    %836 = vmatprep.subr.mxu0 0.0
    %837 = vmatpush1.msra.mxu0 %v480
    %838 = vmatprep.subr.mxu0 0.0
    %839 = vmatpush1.msra.mxu0 %v479
    %840 = vmatprep.subr.mxu0 0.0
    %841 = vmatpush1.msra.mxu0 %v478
    %842 = vmatprep.subr.mxu0 0.0
    %843 = vmatpush1.msra.mxu0 %v477
    %844 = vmatprep.subr.mxu0 0.0
    %845 = vmatpush1.msra.mxu0 %v476
    %846 = vmatprep.subr.mxu0 0.0
    %847 = vmatpush1.msra.mxu0 %v475
    %848 = vmatprep.subr.mxu0 0.0
    %849 = vmatpush1.msra.mxu0 %v474
    %850 = vmatprep.subr.mxu0 0.0
    %851 = vmatpush1.msra.mxu0 %v473
    %852 = vmatprep.subr.mxu0 0.0
    %853 = vmatpush2.msra.mxu0 0.0
    %854 = vmatprep.subr.mxu0 0.0
    %855 = vmatpush2.msra.mxu0 0.0
    %856 = vmatprep.subr.mxu0 0.0
    %857 = vmatpush2.msra.mxu0 0.0
    %858 = vmatprep.subr.mxu0 0.0
    %859 = vmatpush2.msra.mxu0 0.0
    %860 = vmatprep.subr.mxu0 0.0
    %861 = vmatpush2.msra.mxu0 0.0
    %862 = vmatprep.subr.mxu0 0.0
    %863 = vmatpush2.msra.mxu0 0.0
    %864 = vmatprep.subr.mxu0 0.0
    %865 = vmatpush2.msra.mxu0 0.0
    %866 = vmatprep.subr.mxu0 0.0
    %867 = vmatpush2.msra.mxu0 0.0
    %868 = vmatprep.subr.mxu0 0.0
    %869 = vmatpush2.msra.mxu0 0.0
    %870 = vmatprep.subr.mxu0 0.0
    %871 = vmatpush2.msra.mxu0 0.0
    %872 = vmatprep.subr.mxu0 0.0
    %873 = vmatpush2.msra.mxu0 0.0
    %874 = vmatprep.subr.mxu0 0.0
    %875 = vmatpush2.msra.mxu0 0.0
    %876 = vmatprep.subr.mxu0 0.0
    %877 = vmatpush2.msra.mxu0 0.0
    %878 = vmatprep.subr.mxu0 0.0
    %879 = vmatpush2.msra.mxu0 0.0
    %880 = vmatprep.subr.mxu0 0.0
    %881 = vmatpush2.msra.mxu0 0.0
    %882 = vmatprep.subr.mxu0 0.0
    %883 = vmatpush2.msra.mxu0 0.0
    %884 = vmatprep.mubr.f32.mxu0 0.0
    %885 = vmatmul.mubr.f32.gmra.mxu0 %v818
    %v886 = vpop.f32.mrf.mxu0
    %v887 = vadd.f32 %v486, %v886
    %v888 = vpop.f32.mrf.mxu0
    %889 = vdwg.mxu0
    %v890 = vxor.u32 %v887, 2147483648
    %v891 = vmul.f32 %v890, 1.442695
    %v892 = vpow.pop %v891
    %v893 = vadd.f32 %v892, 1.0
    %v894 = vrcp.pop %v893
    %v895 = vmul.f32 1.0, %v894
    %v896 = vtanh.pop %v887
    %v897 = vmul.f32 %v895, %v700
    %899 = vrot.lane.b32.xlu0 %v896, 64
    %v900 = vpop.permute.xlu0 %899
    %v902 = vmul.f32 %v895, %v900
    %904 = vrot.lane.b32.xlu0 %v902, 32
    %v905 = vpop.permute.xlu0 %904
    %v907 = vadd.f32 %v897, %v905
    %v908 = vtanh.pop %v907
    %910 = vrot.lane.b32.xlu0 %v908, 64
    %v911 = vpop.permute.xlu0 %910
    %v913 = vmul.f32 %v895, %v911
    %915 = vrot.lane.b32.xlu0 %v913, 32
    %v916 = vpop.permute.xlu0 %915
    %918 = vst.msk [vmem:[#allocation2 + $0x8] sm:$0xff] %vm339, %v916
    %v919 = vsel %vm339, %v811, 0
    %921 = vmatprep.subr.mxu0 0.0
    %922 = vmatpush1.msra.mxu0 0.0
    %923 = vmatprep.subr.mxu0 0.0
    %924 = vmatpush1.msra.mxu0 0.0
    %925 = vmatprep.subr.mxu0 0.0
    %926 = vmatpush1.msra.mxu0 0.0
    %927 = vmatprep.subr.mxu0 0.0
    %928 = vmatpush1.msra.mxu0 0.0
    %929 = vmatprep.subr.mxu0 0.0
    %930 = vmatpush1.msra.mxu0 0.0
    %931 = vmatprep.subr.mxu0 0.0
    %932 = vmatpush1.msra.mxu0 0.0
    %933 = vmatprep.subr.mxu0 0.0
    %934 = vmatpush1.msra.mxu0 0.0
    %935 = vmatprep.subr.mxu0 0.0
    %936 = vmatpush1.msra.mxu0 0.0
    %937 = vmatprep.subr.mxu0 0.0
    %938 = vmatpush1.msra.mxu0 0.0
    %939 = vmatprep.subr.mxu0 0.0
    %940 = vmatpush1.msra.mxu0 0.0
    %941 = vmatprep.subr.mxu0 0.0
    %942 = vmatpush1.msra.mxu0 0.0
    %943 = vmatprep.subr.mxu0 0.0
    %944 = vmatpush1.msra.mxu0 0.0
    %945 = vmatprep.subr.mxu0 0.0
    %946 = vmatpush1.msra.mxu0 %v472
    %947 = vmatprep.subr.mxu0 0.0
    %948 = vmatpush1.msra.mxu0 %v471
    %949 = vmatprep.subr.mxu0 0.0
    %950 = vmatpush1.msra.mxu0 %v470
    %951 = vmatprep.subr.mxu0 0.0
    %952 = vmatpush1.msra.mxu0 %v469
    %953 = vmatprep.subr.mxu0 0.0
    %954 = vmatpush2.msra.mxu0 0.0
    %955 = vmatprep.subr.mxu0 0.0
    %956 = vmatpush2.msra.mxu0 0.0
    %957 = vmatprep.subr.mxu0 0.0
    %958 = vmatpush2.msra.mxu0 0.0
    %959 = vmatprep.subr.mxu0 0.0
    %960 = vmatpush2.msra.mxu0 0.0
    %961 = vmatprep.subr.mxu0 0.0
    %962 = vmatpush2.msra.mxu0 0.0
    %963 = vmatprep.subr.mxu0 0.0
    %964 = vmatpush2.msra.mxu0 0.0
    %965 = vmatprep.subr.mxu0 0.0
    %966 = vmatpush2.msra.mxu0 0.0
    %967 = vmatprep.subr.mxu0 0.0
    %968 = vmatpush2.msra.mxu0 0.0
    %969 = vmatprep.subr.mxu0 0.0
    %970 = vmatpush2.msra.mxu0 0.0
    %971 = vmatprep.subr.mxu0 0.0
    %972 = vmatpush2.msra.mxu0 0.0
    %973 = vmatprep.subr.mxu0 0.0
    %974 = vmatpush2.msra.mxu0 0.0
    %975 = vmatprep.subr.mxu0 0.0
    %976 = vmatpush2.msra.mxu0 0.0
    %977 = vmatprep.subr.mxu0 0.0
    %978 = vmatpush2.msra.mxu0 0.0
    %979 = vmatprep.subr.mxu0 0.0
    %980 = vmatpush2.msra.mxu0 0.0
    %981 = vmatprep.subr.mxu0 0.0
    %982 = vmatpush2.msra.mxu0 0.0
    %983 = vmatprep.subr.mxu0 0.0
    %984 = vmatpush2.msra.mxu0 0.0
    %985 = vmatprep.mubr.f32.mxu0 0.0
    %986 = vmatmul.mubr.f32.gmra.mxu0 %v919
    %v987 = vpop.f32.mrf.mxu0
    %v988 = vadd.f32 0.0, %v987
    %v989 = vpop.f32.mrf.mxu0
    %990 = vdwg.mxu0
    %v991 = vadd.f32 %v441, %v988
    %v992 = vxor.u32 %v991, 2147483648
    %v993 = vmul.f32 %v992, 1.442695
    %v994 = vpow.pop %v993
    %v995 = vadd.f32 %v994, 1.0
    %v996 = vrcp.pop %v995
    %v997 = vmul.f32 1.0, %v996
    %v998 = vtanh.pop %v991
    %v999 = vmul.f32 %v997, %v802
    %1001 = vrot.lane.b32.xlu0 %v998, 64
    %v1002 = vpop.permute.xlu0 %1001
    %v1004 = vmul.f32 %v997, %v1002
    %1006 = vrot.lane.b32.xlu0 %v1004, 32
    %v1007 = vpop.permute.xlu0 %1006
    %v1009 = vadd.f32 %v999, %v1007
    %v1010 = vtanh.pop %v1009
    %1012 = vrot.lane.b32.xlu0 %v1010, 64
    %v1013 = vpop.permute.xlu0 %1012
    %v1015 = vmul.f32 %v997, %v1013
    %1017 = vrot.lane.b32.xlu0 %v1015, 32
    %v1018 = vpop.permute.xlu0 %1017
    %1020 = vrot.lane.b32.xlu0 %v913, 64
    %v1021 = vpop.permute.xlu0 %1020
    %v1023 = vsel %vm339, %v1018, %v1021
    %v1025 = vsel %vm605, %v1023, 0
    %1027 = vmatprep.subr.mxu0 0.0
    %1028 = vmatpush1.msra.mxu0 0.0
    %1029 = vmatprep.subr.mxu0 0.0
    %1030 = vmatpush1.msra.mxu0 0.0
    %1031 = vmatprep.subr.mxu0 0.0
    %1032 = vmatpush1.msra.mxu0 0.0
    %1033 = vmatprep.subr.mxu0 0.0
    %1034 = vmatpush1.msra.mxu0 0.0
    %1035 = vmatprep.subr.mxu0 0.0
    %1036 = vmatpush1.msra.mxu0 0.0
    %1037 = vmatprep.subr.mxu0 0.0
    %1038 = vmatpush1.msra.mxu0 0.0
    %1039 = vmatprep.subr.mxu0 0.0
    %1040 = vmatpush1.msra.mxu0 0.0
    %1041 = vmatprep.subr.mxu0 0.0
    %1042 = vmatpush1.msra.mxu0 0.0
    %1043 = vmatprep.subr.mxu0 0.0
    %1044 = vmatpush1.msra.mxu0 %v480
    %1045 = vmatprep.subr.mxu0 0.0
    %1046 = vmatpush1.msra.mxu0 %v479
    %1047 = vmatprep.subr.mxu0 0.0
    %1048 = vmatpush1.msra.mxu0 %v478
    %1049 = vmatprep.subr.mxu0 0.0
    %1050 = vmatpush1.msra.mxu0 %v477
    %1051 = vmatprep.subr.mxu0 0.0
    %1052 = vmatpush1.msra.mxu0 %v476
    %1053 = vmatprep.subr.mxu0 0.0
    %1054 = vmatpush1.msra.mxu0 %v475
    %1055 = vmatprep.subr.mxu0 0.0
    %1056 = vmatpush1.msra.mxu0 %v474
    %1057 = vmatprep.subr.mxu0 0.0
    %1058 = vmatpush1.msra.mxu0 %v473
    %1059 = vmatprep.subr.mxu0 0.0
    %1060 = vmatpush2.msra.mxu0 0.0
    %1061 = vmatprep.subr.mxu0 0.0
    %1062 = vmatpush2.msra.mxu0 0.0
    %1063 = vmatprep.subr.mxu0 0.0
    %1064 = vmatpush2.msra.mxu0 0.0
    %1065 = vmatprep.subr.mxu0 0.0
    %1066 = vmatpush2.msra.mxu0 0.0
    %1067 = vmatprep.subr.mxu0 0.0
    %1068 = vmatpush2.msra.mxu0 0.0
    %1069 = vmatprep.subr.mxu0 0.0
    %1070 = vmatpush2.msra.mxu0 0.0
    %1071 = vmatprep.subr.mxu0 0.0
    %1072 = vmatpush2.msra.mxu0 0.0
    %1073 = vmatprep.subr.mxu0 0.0
    %1074 = vmatpush2.msra.mxu0 0.0
    %1075 = vmatprep.subr.mxu0 0.0
    %1076 = vmatpush2.msra.mxu0 0.0
    %1077 = vmatprep.subr.mxu0 0.0
    %1078 = vmatpush2.msra.mxu0 0.0
    %1079 = vmatprep.subr.mxu0 0.0
    %1080 = vmatpush2.msra.mxu0 0.0
    %1081 = vmatprep.subr.mxu0 0.0
    %1082 = vmatpush2.msra.mxu0 0.0
    %1083 = vmatprep.subr.mxu0 0.0
    %1084 = vmatpush2.msra.mxu0 0.0
    %1085 = vmatprep.subr.mxu0 0.0
    %1086 = vmatpush2.msra.mxu0 0.0
    %1087 = vmatprep.subr.mxu0 0.0
    %1088 = vmatpush2.msra.mxu0 0.0
    %1089 = vmatprep.subr.mxu0 0.0
    %1090 = vmatpush2.msra.mxu0 0.0
    %1091 = vmatprep.mubr.f32.mxu0 0.0
    %1092 = vmatmul.mubr.f32.gmra.mxu0 %v1025
    %v1093 = vpop.f32.mrf.mxu0
    %v1094 = vadd.f32 %v486, %v1093
    %v1095 = vpop.f32.mrf.mxu0
    %1096 = vdwg.mxu0
    %v1097 = vxor.u32 %v1094, 2147483648
    %v1098 = vmul.f32 %v1097, 1.442695
    %v1099 = vpow.pop %v1098
    %v1100 = vadd.f32 %v1099, 1.0
    %v1101 = vrcp.pop %v1100
    %v1102 = vmul.f32 1.0, %v1101
    %v1103 = vtanh.pop %v1094
    %v1104 = vmul.f32 %v1102, %v907
    %1106 = vrot.lane.b32.xlu0 %v1103, 64
    %v1107 = vpop.permute.xlu0 %1106
    %v1109 = vmul.f32 %v1102, %v1107
    %1111 = vrot.lane.b32.xlu0 %v1109, 32
    %v1112 = vpop.permute.xlu0 %1111
    %v1114 = vadd.f32 %v1104, %v1112
    %v1115 = vtanh.pop %v1114
    %1117 = vrot.lane.b32.xlu0 %v1115, 64
    %v1118 = vpop.permute.xlu0 %1117
    %v1120 = vmul.f32 %v1102, %v1118
    %1122 = vrot.lane.b32.xlu0 %v1120, 32
    %v1123 = vpop.permute.xlu0 %1122
    %1125 = vst.msk [vmem:[#allocation2 + $0x10] sm:$0xff] %vm339, %v1123
    %v1126 = vsel %vm339, %v1018, 0
    %1128 = vmatprep.subr.mxu0 0.0
    %1129 = vmatpush1.msra.mxu0 0.0
    %1130 = vmatprep.subr.mxu0 0.0
    %1131 = vmatpush1.msra.mxu0 0.0
    %1132 = vmatprep.subr.mxu0 0.0
    %1133 = vmatpush1.msra.mxu0 0.0
    %1134 = vmatprep.subr.mxu0 0.0
    %1135 = vmatpush1.msra.mxu0 0.0
    %1136 = vmatprep.subr.mxu0 0.0
    %1137 = vmatpush1.msra.mxu0 0.0
    %1138 = vmatprep.subr.mxu0 0.0
    %1139 = vmatpush1.msra.mxu0 0.0
    %1140 = vmatprep.subr.mxu0 0.0
    %1141 = vmatpush1.msra.mxu0 0.0
    %1142 = vmatprep.subr.mxu0 0.0
    %1143 = vmatpush1.msra.mxu0 0.0
    %1144 = vmatprep.subr.mxu0 0.0
    %1145 = vmatpush1.msra.mxu0 0.0
    %1146 = vmatprep.subr.mxu0 0.0
    %1147 = vmatpush1.msra.mxu0 0.0
    %1148 = vmatprep.subr.mxu0 0.0
    %1149 = vmatpush1.msra.mxu0 0.0
    %1150 = vmatprep.subr.mxu0 0.0
    %1151 = vmatpush1.msra.mxu0 0.0
    %1152 = vmatprep.subr.mxu0 0.0
    %1153 = vmatpush1.msra.mxu0 %v472
    %1154 = vmatprep.subr.mxu0 0.0
    %1155 = vmatpush1.msra.mxu0 %v471
    %1156 = vmatprep.subr.mxu0 0.0
    %1157 = vmatpush1.msra.mxu0 %v470
    %1158 = vmatprep.subr.mxu0 0.0
    %1159 = vmatpush1.msra.mxu0 %v469
    %1160 = vmatprep.subr.mxu0 0.0
    %1161 = vmatpush2.msra.mxu0 0.0
    %1162 = vmatprep.subr.mxu0 0.0
    %1163 = vmatpush2.msra.mxu0 0.0
    %1164 = vmatprep.subr.mxu0 0.0
    %1165 = vmatpush2.msra.mxu0 0.0
    %1166 = vmatprep.subr.mxu0 0.0
    %1167 = vmatpush2.msra.mxu0 0.0
    %1168 = vmatprep.subr.mxu0 0.0
    %1169 = vmatpush2.msra.mxu0 0.0
    %1170 = vmatprep.subr.mxu0 0.0
    %1171 = vmatpush2.msra.mxu0 0.0
    %1172 = vmatprep.subr.mxu0 0.0
    %1173 = vmatpush2.msra.mxu0 0.0
    %1174 = vmatprep.subr.mxu0 0.0
    %1175 = vmatpush2.msra.mxu0 0.0
    %1176 = vmatprep.subr.mxu0 0.0
    %1177 = vmatpush2.msra.mxu0 0.0
    %1178 = vmatprep.subr.mxu0 0.0
    %1179 = vmatpush2.msra.mxu0 0.0
    %1180 = vmatprep.subr.mxu0 0.0
    %1181 = vmatpush2.msra.mxu0 0.0
    %1182 = vmatprep.subr.mxu0 0.0
    %1183 = vmatpush2.msra.mxu0 0.0
    %1184 = vmatprep.subr.mxu0 0.0
    %1185 = vmatpush2.msra.mxu0 0.0
    %1186 = vmatprep.subr.mxu0 0.0
    %1187 = vmatpush2.msra.mxu0 0.0
    %1188 = vmatprep.subr.mxu0 0.0
    %1189 = vmatpush2.msra.mxu0 0.0
    %1190 = vmatprep.subr.mxu0 0.0
    %1191 = vmatpush2.msra.mxu0 0.0
    %1192 = vmatprep.mubr.f32.mxu0 0.0
    %1193 = vmatmul.mubr.f32.gmra.mxu0 %v1126
    %v1194 = vpop.f32.mrf.mxu0
    %v1195 = vadd.f32 0.0, %v1194
    %v1196 = vpop.f32.mrf.mxu0
    %1197 = vdwg.mxu0
    %v1198 = vadd.f32 %v446, %v1195
    %v1199 = vxor.u32 %v1198, 2147483648
    %v1200 = vmul.f32 %v1199, 1.442695
    %v1201 = vpow.pop %v1200
    %v1202 = vadd.f32 %v1201, 1.0
    %v1203 = vrcp.pop %v1202
    %v1204 = vmul.f32 1.0, %v1203
    %v1205 = vtanh.pop %v1198
    %v1206 = vmul.f32 %v1204, %v1009
    %1208 = vrot.lane.b32.xlu0 %v1205, 64
    %v1209 = vpop.permute.xlu0 %1208
    %v1211 = vmul.f32 %v1204, %v1209
    %1213 = vrot.lane.b32.xlu0 %v1211, 32
    %v1214 = vpop.permute.xlu0 %1213
    %v1216 = vadd.f32 %v1206, %v1214
    %v1217 = vtanh.pop %v1216
    %1219 = vrot.lane.b32.xlu0 %v1217, 64
    %v1220 = vpop.permute.xlu0 %1219
    %v1222 = vmul.f32 %v1204, %v1220
    %1224 = vrot.lane.b32.xlu0 %v1222, 32
    %v1225 = vpop.permute.xlu0 %1224
    %1227 = vrot.lane.b32.xlu0 %v1120, 64
    %v1228 = vpop.permute.xlu0 %1227
    %v1230 = vsel %vm339, %v1225, %v1228
    %v1232 = vsel %vm605, %v1230, 0
    %1234 = vmatprep.subr.mxu0 0.0
    %1235 = vmatpush1.msra.mxu0 0.0
    %1236 = vmatprep.subr.mxu0 0.0
    %1237 = vmatpush1.msra.mxu0 0.0
    %1238 = vmatprep.subr.mxu0 0.0
    %1239 = vmatpush1.msra.mxu0 0.0
    %1240 = vmatprep.subr.mxu0 0.0
    %1241 = vmatpush1.msra.mxu0 0.0
    %1242 = vmatprep.subr.mxu0 0.0
    %1243 = vmatpush1.msra.mxu0 0.0
    %1244 = vmatprep.subr.mxu0 0.0
    %1245 = vmatpush1.msra.mxu0 0.0
    %1246 = vmatprep.subr.mxu0 0.0
    %1247 = vmatpush1.msra.mxu0 0.0
    %1248 = vmatprep.subr.mxu0 0.0
    %1249 = vmatpush1.msra.mxu0 0.0
    %1250 = vmatprep.subr.mxu0 0.0
    %1251 = vmatpush1.msra.mxu0 %v480
    %1252 = vmatprep.subr.mxu0 0.0
    %1253 = vmatpush1.msra.mxu0 %v479
    %1254 = vmatprep.subr.mxu0 0.0
    %1255 = vmatpush1.msra.mxu0 %v478
    %1256 = vmatprep.subr.mxu0 0.0
    %1257 = vmatpush1.msra.mxu0 %v477
    %1258 = vmatprep.subr.mxu0 0.0
    %1259 = vmatpush1.msra.mxu0 %v476
    %1260 = vmatprep.subr.mxu0 0.0
    %1261 = vmatpush1.msra.mxu0 %v475
    %1262 = vmatprep.subr.mxu0 0.0
    %1263 = vmatpush1.msra.mxu0 %v474
    %1264 = vmatprep.subr.mxu0 0.0
    %1265 = vmatpush1.msra.mxu0 %v473
    %1266 = vmatprep.subr.mxu0 0.0
    %1267 = vmatpush2.msra.mxu0 0.0
    %1268 = vmatprep.subr.mxu0 0.0
    %1269 = vmatpush2.msra.mxu0 0.0
    %1270 = vmatprep.subr.mxu0 0.0
    %1271 = vmatpush2.msra.mxu0 0.0
    %1272 = vmatprep.subr.mxu0 0.0
    %1273 = vmatpush2.msra.mxu0 0.0
    %1274 = vmatprep.subr.mxu0 0.0
    %1275 = vmatpush2.msra.mxu0 0.0
    %1276 = vmatprep.subr.mxu0 0.0
    %1277 = vmatpush2.msra.mxu0 0.0
    %1278 = vmatprep.subr.mxu0 0.0
    %1279 = vmatpush2.msra.mxu0 0.0
    %1280 = vmatprep.subr.mxu0 0.0
    %1281 = vmatpush2.msra.mxu0 0.0
    %1282 = vmatprep.subr.mxu0 0.0
    %1283 = vmatpush2.msra.mxu0 0.0
    %1284 = vmatprep.subr.mxu0 0.0
    %1285 = vmatpush2.msra.mxu0 0.0
    %1286 = vmatprep.subr.mxu0 0.0
    %1287 = vmatpush2.msra.mxu0 0.0
    %1288 = vmatprep.subr.mxu0 0.0
    %1289 = vmatpush2.msra.mxu0 0.0
    %1290 = vmatprep.subr.mxu0 0.0
    %1291 = vmatpush2.msra.mxu0 0.0
    %1292 = vmatprep.subr.mxu0 0.0
    %1293 = vmatpush2.msra.mxu0 0.0
    %1294 = vmatprep.subr.mxu0 0.0
    %1295 = vmatpush2.msra.mxu0 0.0
    %1296 = vmatprep.subr.mxu0 0.0
    %1297 = vmatpush2.msra.mxu0 0.0
    %1298 = vmatprep.mubr.f32.mxu0 0.0
    %1299 = vmatmul.mubr.f32.gmra.mxu0 %v1232
    %v1300 = vpop.f32.mrf.mxu0
    %v1301 = vadd.f32 %v486, %v1300
    %v1302 = vpop.f32.mrf.mxu0
    %1303 = vdwg.mxu0
    %v1304 = vxor.u32 %v1301, 2147483648
    %v1305 = vmul.f32 %v1304, 1.442695
    %v1306 = vpow.pop %v1305
    %v1307 = vadd.f32 %v1306, 1.0
    %v1308 = vrcp.pop %v1307
    %v1309 = vmul.f32 1.0, %v1308
    %v1310 = vtanh.pop %v1301
    %v1311 = vmul.f32 %v1309, %v1114
    %1313 = vrot.lane.b32.xlu0 %v1310, 64
    %v1314 = vpop.permute.xlu0 %1313
    %v1316 = vmul.f32 %v1309, %v1314
    %1318 = vrot.lane.b32.xlu0 %v1316, 32
    %v1319 = vpop.permute.xlu0 %1318
    %v1321 = vadd.f32 %v1311, %v1319
    %v1322 = vtanh.pop %v1321
    %1324 = vrot.lane.b32.xlu0 %v1322, 64
    %v1325 = vpop.permute.xlu0 %1324
    %v1327 = vmul.f32 %v1309, %v1325
    %1329 = vrot.lane.b32.xlu0 %v1327, 32
    %v1330 = vpop.permute.xlu0 %1329
    %1332 = vst.msk [vmem:[#allocation2 + $0x18] sm:$0xff] %vm339, %v1330
    %v1333 = vsel %vm339, %v1225, 0
    %1335 = vmatprep.subr.mxu0 0.0
    %1336 = vmatpush1.msra.mxu0 0.0
    %1337 = vmatprep.subr.mxu0 0.0
    %1338 = vmatpush1.msra.mxu0 0.0
    %1339 = vmatprep.subr.mxu0 0.0
    %1340 = vmatpush1.msra.mxu0 0.0
    %1341 = vmatprep.subr.mxu0 0.0
    %1342 = vmatpush1.msra.mxu0 0.0
    %1343 = vmatprep.subr.mxu0 0.0
    %1344 = vmatpush1.msra.mxu0 0.0
    %1345 = vmatprep.subr.mxu0 0.0
    %1346 = vmatpush1.msra.mxu0 0.0
    %1347 = vmatprep.subr.mxu0 0.0
    %1348 = vmatpush1.msra.mxu0 0.0
    %1349 = vmatprep.subr.mxu0 0.0
    %1350 = vmatpush1.msra.mxu0 0.0
    %1351 = vmatprep.subr.mxu0 0.0
    %1352 = vmatpush1.msra.mxu0 0.0
    %1353 = vmatprep.subr.mxu0 0.0
    %1354 = vmatpush1.msra.mxu0 0.0
    %1355 = vmatprep.subr.mxu0 0.0
    %1356 = vmatpush1.msra.mxu0 0.0
    %1357 = vmatprep.subr.mxu0 0.0
    %1358 = vmatpush1.msra.mxu0 0.0
    %1359 = vmatprep.subr.mxu0 0.0
    %1360 = vmatpush1.msra.mxu0 %v472
    %1361 = vmatprep.subr.mxu0 0.0
    %1362 = vmatpush1.msra.mxu0 %v471
    %1363 = vmatprep.subr.mxu0 0.0
    %1364 = vmatpush1.msra.mxu0 %v470
    %1365 = vmatprep.subr.mxu0 0.0
    %1366 = vmatpush1.msra.mxu0 %v469
    %1367 = vmatprep.subr.mxu0 0.0
    %1368 = vmatpush2.msra.mxu0 0.0
    %1369 = vmatprep.subr.mxu0 0.0
    %1370 = vmatpush2.msra.mxu0 0.0
    %1371 = vmatprep.subr.mxu0 0.0
    %1372 = vmatpush2.msra.mxu0 0.0
    %1373 = vmatprep.subr.mxu0 0.0
    %1374 = vmatpush2.msra.mxu0 0.0
    %1375 = vmatprep.subr.mxu0 0.0
    %1376 = vmatpush2.msra.mxu0 0.0
    %1377 = vmatprep.subr.mxu0 0.0
    %1378 = vmatpush2.msra.mxu0 0.0
    %1379 = vmatprep.subr.mxu0 0.0
    %1380 = vmatpush2.msra.mxu0 0.0
    %1381 = vmatprep.subr.mxu0 0.0
    %1382 = vmatpush2.msra.mxu0 0.0
    %1383 = vmatprep.subr.mxu0 0.0
    %1384 = vmatpush2.msra.mxu0 0.0
    %1385 = vmatprep.subr.mxu0 0.0
    %1386 = vmatpush2.msra.mxu0 0.0
    %1387 = vmatprep.subr.mxu0 0.0
    %1388 = vmatpush2.msra.mxu0 0.0
    %1389 = vmatprep.subr.mxu0 0.0
    %1390 = vmatpush2.msra.mxu0 0.0
    %1391 = vmatprep.subr.mxu0 0.0
    %1392 = vmatpush2.msra.mxu0 0.0
    %1393 = vmatprep.subr.mxu0 0.0
    %1394 = vmatpush2.msra.mxu0 0.0
    %1395 = vmatprep.subr.mxu0 0.0
    %1396 = vmatpush2.msra.mxu0 0.0
    %1397 = vmatprep.subr.mxu0 0.0
    %1398 = vmatpush2.msra.mxu0 0.0
    %1399 = vmatprep.mubr.f32.mxu0 0.0
    %1400 = vmatmul.mubr.f32.gmra.mxu0 %v1333
    %v1401 = vpop.f32.mrf.mxu0
    %v1402 = vadd.f32 0.0, %v1401
    %v1403 = vpop.f32.mrf.mxu0
    %1404 = vdwg.mxu0
    %v1405 = vadd.f32 %v451, %v1402
    %v1406 = vxor.u32 %v1405, 2147483648
    %v1407 = vmul.f32 %v1406, 1.442695
    %v1408 = vpow.pop %v1407
    %v1409 = vadd.f32 %v1408, 1.0
    %v1410 = vrcp.pop %v1409
    %v1411 = vmul.f32 1.0, %v1410
    %v1412 = vtanh.pop %v1405
    %v1413 = vmul.f32 %v1411, %v1216
    %1415 = vrot.lane.b32.xlu0 %v1412, 64
    %v1416 = vpop.permute.xlu0 %1415
    %v1418 = vmul.f32 %v1411, %v1416
    %1420 = vrot.lane.b32.xlu0 %v1418, 32
    %v1421 = vpop.permute.xlu0 %1420
    %v1423 = vadd.f32 %v1413, %v1421
    %v1424 = vtanh.pop %v1423
    %1426 = vrot.lane.b32.xlu0 %v1424, 64
    %v1427 = vpop.permute.xlu0 %1426
    %v1429 = vmul.f32 %v1411, %v1427
    %1431 = vrot.lane.b32.xlu0 %v1429, 32
    %v1432 = vpop.permute.xlu0 %1431
    %1434 = vrot.lane.b32.xlu0 %v1327, 64
    %v1435 = vpop.permute.xlu0 %1434
    %v1437 = vsel %vm339, %v1432, %v1435
    %v1439 = vsel %vm605, %v1437, 0
    %1441 = vmatprep.subr.mxu0 0.0
    %1442 = vmatpush1.msra.mxu0 0.0
    %1443 = vmatprep.subr.mxu0 0.0
    %1444 = vmatpush1.msra.mxu0 0.0
    %1445 = vmatprep.subr.mxu0 0.0
    %1446 = vmatpush1.msra.mxu0 0.0
    %1447 = vmatprep.subr.mxu0 0.0
    %1448 = vmatpush1.msra.mxu0 0.0
    %1449 = vmatprep.subr.mxu0 0.0
    %1450 = vmatpush1.msra.mxu0 0.0
    %1451 = vmatprep.subr.mxu0 0.0
    %1452 = vmatpush1.msra.mxu0 0.0
    %1453 = vmatprep.subr.mxu0 0.0
    %1454 = vmatpush1.msra.mxu0 0.0
    %1455 = vmatprep.subr.mxu0 0.0
    %1456 = vmatpush1.msra.mxu0 0.0
    %1457 = vmatprep.subr.mxu0 0.0
    %1458 = vmatpush1.msra.mxu0 %v480
    %1459 = vmatprep.subr.mxu0 0.0
    %1460 = vmatpush1.msra.mxu0 %v479
    %1461 = vmatprep.subr.mxu0 0.0
    %1462 = vmatpush1.msra.mxu0 %v478
    %1463 = vmatprep.subr.mxu0 0.0
    %1464 = vmatpush1.msra.mxu0 %v477
    %1465 = vmatprep.subr.mxu0 0.0
    %1466 = vmatpush1.msra.mxu0 %v476
    %1467 = vmatprep.subr.mxu0 0.0
    %1468 = vmatpush1.msra.mxu0 %v475
    %1469 = vmatprep.subr.mxu0 0.0
    %1470 = vmatpush1.msra.mxu0 %v474
    %1471 = vmatprep.subr.mxu0 0.0
    %1472 = vmatpush1.msra.mxu0 %v473
    %1473 = vmatprep.subr.mxu0 0.0
    %1474 = vmatpush2.msra.mxu0 0.0
    %1475 = vmatprep.subr.mxu0 0.0
    %1476 = vmatpush2.msra.mxu0 0.0
    %1477 = vmatprep.subr.mxu0 0.0
    %1478 = vmatpush2.msra.mxu0 0.0
    %1479 = vmatprep.subr.mxu0 0.0
    %1480 = vmatpush2.msra.mxu0 0.0
    %1481 = vmatprep.subr.mxu0 0.0
    %1482 = vmatpush2.msra.mxu0 0.0
    %1483 = vmatprep.subr.mxu0 0.0
    %1484 = vmatpush2.msra.mxu0 0.0
    %1485 = vmatprep.subr.mxu0 0.0
    %1486 = vmatpush2.msra.mxu0 0.0
    %1487 = vmatprep.subr.mxu0 0.0
    %1488 = vmatpush2.msra.mxu0 0.0
    %1489 = vmatprep.subr.mxu0 0.0
    %1490 = vmatpush2.msra.mxu0 0.0
    %1491 = vmatprep.subr.mxu0 0.0
    %1492 = vmatpush2.msra.mxu0 0.0
    %1493 = vmatprep.subr.mxu0 0.0
    %1494 = vmatpush2.msra.mxu0 0.0
    %1495 = vmatprep.subr.mxu0 0.0
    %1496 = vmatpush2.msra.mxu0 0.0
    %1497 = vmatprep.subr.mxu0 0.0
    %1498 = vmatpush2.msra.mxu0 0.0
    %1499 = vmatprep.subr.mxu0 0.0
    %1500 = vmatpush2.msra.mxu0 0.0
    %1501 = vmatprep.subr.mxu0 0.0
    %1502 = vmatpush2.msra.mxu0 0.0
    %1503 = vmatprep.subr.mxu0 0.0
    %1504 = vmatpush2.msra.mxu0 0.0
    %1505 = vmatprep.mubr.f32.mxu0 0.0
    %1506 = vmatmul.mubr.f32.gmra.mxu0 %v1439
    %v1507 = vpop.f32.mrf.mxu0
    %v1508 = vadd.f32 %v486, %v1507
    %v1509 = vpop.f32.mrf.mxu0
    %1510 = vdwg.mxu0
    %v1511 = vxor.u32 %v1508, 2147483648
    %v1512 = vmul.f32 %v1511, 1.442695
    %v1513 = vpow.pop %v1512
    %v1514 = vadd.f32 %v1513, 1.0
    %v1515 = vrcp.pop %v1514
    %v1516 = vmul.f32 1.0, %v1515
    %v1517 = vtanh.pop %v1508
    %v1518 = vmul.f32 %v1516, %v1321
    %1520 = vrot.lane.b32.xlu0 %v1517, 64
    %v1521 = vpop.permute.xlu0 %1520
    %v1523 = vmul.f32 %v1516, %v1521
    %1525 = vrot.lane.b32.xlu0 %v1523, 32
    %v1526 = vpop.permute.xlu0 %1525
    %v1528 = vadd.f32 %v1518, %v1526
    %v1529 = vtanh.pop %v1528
    %1531 = vrot.lane.b32.xlu0 %v1529, 64
    %v1532 = vpop.permute.xlu0 %1531
    %v1534 = vmul.f32 %v1516, %v1532
    %1536 = vrot.lane.b32.xlu0 %v1534, 32
    %v1537 = vpop.permute.xlu0 %1536
    %1539 = vst.msk [vmem:[#allocation2 + $0x20] sm:$0xff] %vm339, %v1537
    %v1540 = vsel %vm339, %v1432, 0
    %1542 = vmatprep.subr.mxu0 0.0
    %1543 = vmatpush1.msra.mxu0 0.0
    %1544 = vmatprep.subr.mxu0 0.0
    %1545 = vmatpush1.msra.mxu0 0.0
    %1546 = vmatprep.subr.mxu0 0.0
    %1547 = vmatpush1.msra.mxu0 0.0
    %1548 = vmatprep.subr.mxu0 0.0
    %1549 = vmatpush1.msra.mxu0 0.0
    %1550 = vmatprep.subr.mxu0 0.0
    %1551 = vmatpush1.msra.mxu0 0.0
    %1552 = vmatprep.subr.mxu0 0.0
    %1553 = vmatpush1.msra.mxu0 0.0
    %1554 = vmatprep.subr.mxu0 0.0
    %1555 = vmatpush1.msra.mxu0 0.0
    %1556 = vmatprep.subr.mxu0 0.0
    %1557 = vmatpush1.msra.mxu0 0.0
    %1558 = vmatprep.subr.mxu0 0.0
    %1559 = vmatpush1.msra.mxu0 0.0
    %1560 = vmatprep.subr.mxu0 0.0
    %1561 = vmatpush1.msra.mxu0 0.0
    %1562 = vmatprep.subr.mxu0 0.0
    %1563 = vmatpush1.msra.mxu0 0.0
    %1564 = vmatprep.subr.mxu0 0.0
    %1565 = vmatpush1.msra.mxu0 0.0
    %1566 = vmatprep.subr.mxu0 0.0
    %1567 = vmatpush1.msra.mxu0 %v472
    %1568 = vmatprep.subr.mxu0 0.0
    %1569 = vmatpush1.msra.mxu0 %v471
    %1570 = vmatprep.subr.mxu0 0.0
    %1571 = vmatpush1.msra.mxu0 %v470
    %1572 = vmatprep.subr.mxu0 0.0
    %1573 = vmatpush1.msra.mxu0 %v469
    %1574 = vmatprep.subr.mxu0 0.0
    %1575 = vmatpush2.msra.mxu0 0.0
    %1576 = vmatprep.subr.mxu0 0.0
    %1577 = vmatpush2.msra.mxu0 0.0
    %1578 = vmatprep.subr.mxu0 0.0
    %1579 = vmatpush2.msra.mxu0 0.0
    %1580 = vmatprep.subr.mxu0 0.0
    %1581 = vmatpush2.msra.mxu0 0.0
    %1582 = vmatprep.subr.mxu0 0.0
    %1583 = vmatpush2.msra.mxu0 0.0
    %1584 = vmatprep.subr.mxu0 0.0
    %1585 = vmatpush2.msra.mxu0 0.0
    %1586 = vmatprep.subr.mxu0 0.0
    %1587 = vmatpush2.msra.mxu0 0.0
    %1588 = vmatprep.subr.mxu0 0.0
    %1589 = vmatpush2.msra.mxu0 0.0
    %1590 = vmatprep.subr.mxu0 0.0
    %1591 = vmatpush2.msra.mxu0 0.0
    %1592 = vmatprep.subr.mxu0 0.0
    %1593 = vmatpush2.msra.mxu0 0.0
    %1594 = vmatprep.subr.mxu0 0.0
    %1595 = vmatpush2.msra.mxu0 0.0
    %1596 = vmatprep.subr.mxu0 0.0
    %1597 = vmatpush2.msra.mxu0 0.0
    %1598 = vmatprep.subr.mxu0 0.0
    %1599 = vmatpush2.msra.mxu0 0.0
    %1600 = vmatprep.subr.mxu0 0.0
    %1601 = vmatpush2.msra.mxu0 0.0
    %1602 = vmatprep.subr.mxu0 0.0
    %1603 = vmatpush2.msra.mxu0 0.0
    %1604 = vmatprep.subr.mxu0 0.0
    %1605 = vmatpush2.msra.mxu0 0.0
    %1606 = vmatprep.mubr.f32.mxu0 0.0
    %1607 = vmatmul.mubr.f32.gmra.mxu0 %v1540
    %v1608 = vpop.f32.mrf.mxu0
    %v1609 = vadd.f32 0.0, %v1608
    %v1610 = vpop.f32.mrf.mxu0
    %1611 = vdwg.mxu0
    %v1612 = vadd.f32 %v456, %v1609
    %v1613 = vxor.u32 %v1612, 2147483648
    %v1614 = vmul.f32 %v1613, 1.442695
    %v1615 = vpow.pop %v1614
    %v1616 = vadd.f32 %v1615, 1.0
    %v1617 = vrcp.pop %v1616
    %v1618 = vmul.f32 1.0, %v1617
    %v1619 = vtanh.pop %v1612
    %v1620 = vmul.f32 %v1618, %v1423
    %1622 = vrot.lane.b32.xlu0 %v1619, 64
    %v1623 = vpop.permute.xlu0 %1622
    %v1625 = vmul.f32 %v1618, %v1623
    %1627 = vrot.lane.b32.xlu0 %v1625, 32
    %v1628 = vpop.permute.xlu0 %1627
    %v1630 = vadd.f32 %v1620, %v1628
    %v1631 = vtanh.pop %v1630
    %1633 = vrot.lane.b32.xlu0 %v1631, 64
    %v1634 = vpop.permute.xlu0 %1633
    %v1636 = vmul.f32 %v1618, %v1634
    %1638 = vrot.lane.b32.xlu0 %v1636, 32
    %v1639 = vpop.permute.xlu0 %1638
    %1641 = vrot.lane.b32.xlu0 %v1534, 64
    %v1642 = vpop.permute.xlu0 %1641
    %v1644 = vsel %vm339, %v1639, %v1642
    %v1646 = vsel %vm605, %v1644, 0
    %1648 = vmatprep.subr.mxu0 0.0
    %1649 = vmatpush1.msra.mxu0 0.0
    %1650 = vmatprep.subr.mxu0 0.0
    %1651 = vmatpush1.msra.mxu0 0.0
    %1652 = vmatprep.subr.mxu0 0.0
    %1653 = vmatpush1.msra.mxu0 0.0
    %1654 = vmatprep.subr.mxu0 0.0
    %1655 = vmatpush1.msra.mxu0 0.0
    %1656 = vmatprep.subr.mxu0 0.0
    %1657 = vmatpush1.msra.mxu0 0.0
    %1658 = vmatprep.subr.mxu0 0.0
    %1659 = vmatpush1.msra.mxu0 0.0
    %1660 = vmatprep.subr.mxu0 0.0
    %1661 = vmatpush1.msra.mxu0 0.0
    %1662 = vmatprep.subr.mxu0 0.0
    %1663 = vmatpush1.msra.mxu0 0.0
    %1664 = vmatprep.subr.mxu0 0.0
    %1665 = vmatpush1.msra.mxu0 %v480
    %1666 = vmatprep.subr.mxu0 0.0
    %1667 = vmatpush1.msra.mxu0 %v479
    %1668 = vmatprep.subr.mxu0 0.0
    %1669 = vmatpush1.msra.mxu0 %v478
    %1670 = vmatprep.subr.mxu0 0.0
    %1671 = vmatpush1.msra.mxu0 %v477
    %1672 = vmatprep.subr.mxu0 0.0
    %1673 = vmatpush1.msra.mxu0 %v476
    %1674 = vmatprep.subr.mxu0 0.0
    %1675 = vmatpush1.msra.mxu0 %v475
    %1676 = vmatprep.subr.mxu0 0.0
    %1677 = vmatpush1.msra.mxu0 %v474
    %1678 = vmatprep.subr.mxu0 0.0
    %1679 = vmatpush1.msra.mxu0 %v473
    %1680 = vmatprep.subr.mxu0 0.0
    %1681 = vmatpush2.msra.mxu0 0.0
    %1682 = vmatprep.subr.mxu0 0.0
    %1683 = vmatpush2.msra.mxu0 0.0
    %1684 = vmatprep.subr.mxu0 0.0
    %1685 = vmatpush2.msra.mxu0 0.0
    %1686 = vmatprep.subr.mxu0 0.0
    %1687 = vmatpush2.msra.mxu0 0.0
    %1688 = vmatprep.subr.mxu0 0.0
    %1689 = vmatpush2.msra.mxu0 0.0
    %1690 = vmatprep.subr.mxu0 0.0
    %1691 = vmatpush2.msra.mxu0 0.0
    %1692 = vmatprep.subr.mxu0 0.0
    %1693 = vmatpush2.msra.mxu0 0.0
    %1694 = vmatprep.subr.mxu0 0.0
    %1695 = vmatpush2.msra.mxu0 0.0
    %1696 = vmatprep.subr.mxu0 0.0
    %1697 = vmatpush2.msra.mxu0 0.0
    %1698 = vmatprep.subr.mxu0 0.0
    %1699 = vmatpush2.msra.mxu0 0.0
    %1700 = vmatprep.subr.mxu0 0.0
    %1701 = vmatpush2.msra.mxu0 0.0
    %1702 = vmatprep.subr.mxu0 0.0
    %1703 = vmatpush2.msra.mxu0 0.0
    %1704 = vmatprep.subr.mxu0 0.0
    %1705 = vmatpush2.msra.mxu0 0.0
    %1706 = vmatprep.subr.mxu0 0.0
    %1707 = vmatpush2.msra.mxu0 0.0
    %1708 = vmatprep.subr.mxu0 0.0
    %1709 = vmatpush2.msra.mxu0 0.0
    %1710 = vmatprep.subr.mxu0 0.0
    %1711 = vmatpush2.msra.mxu0 0.0
    %1712 = vmatprep.mubr.f32.mxu0 0.0
    %1713 = vmatmul.mubr.f32.gmra.mxu0 %v1646
    %v1714 = vpop.f32.mrf.mxu0
    %v1715 = vadd.f32 %v486, %v1714
    %v1716 = vpop.f32.mrf.mxu0
    %1717 = vdwg.mxu0
    %v1718 = vxor.u32 %v1715, 2147483648
    %v1719 = vmul.f32 %v1718, 1.442695
    %v1720 = vpow.pop %v1719
    %v1721 = vadd.f32 %v1720, 1.0
    %v1722 = vrcp.pop %v1721
    %v1723 = vmul.f32 1.0, %v1722
    %v1724 = vtanh.pop %v1715
    %v1725 = vmul.f32 %v1723, %v1528
    %1727 = vrot.lane.b32.xlu0 %v1724, 64
    %v1728 = vpop.permute.xlu0 %1727
    %v1730 = vmul.f32 %v1723, %v1728
    %1732 = vrot.lane.b32.xlu0 %v1730, 32
    %v1733 = vpop.permute.xlu0 %1732
    %v1735 = vadd.f32 %v1725, %v1733
    %v1736 = vtanh.pop %v1735
    %1738 = vrot.lane.b32.xlu0 %v1736, 64
    %v1739 = vpop.permute.xlu0 %1738
    %v1741 = vmul.f32 %v1723, %v1739
    %1743 = vrot.lane.b32.xlu0 %v1741, 32
    %v1744 = vpop.permute.xlu0 %1743
    %1746 = vst.msk [vmem:[#allocation2 + $0x28] sm:$0xff] %vm339, %v1744
    %v1747 = vsel %vm339, %v1639, 0
    %1749 = vmatprep.subr.mxu0 0.0
    %1750 = vmatpush1.msra.mxu0 0.0
    %1751 = vmatprep.subr.mxu0 0.0
    %1752 = vmatpush1.msra.mxu0 0.0
    %1753 = vmatprep.subr.mxu0 0.0
    %1754 = vmatpush1.msra.mxu0 0.0
    %1755 = vmatprep.subr.mxu0 0.0
    %1756 = vmatpush1.msra.mxu0 0.0
    %1757 = vmatprep.subr.mxu0 0.0
    %1758 = vmatpush1.msra.mxu0 0.0
    %1759 = vmatprep.subr.mxu0 0.0
    %1760 = vmatpush1.msra.mxu0 0.0
    %1761 = vmatprep.subr.mxu0 0.0
    %1762 = vmatpush1.msra.mxu0 0.0
    %1763 = vmatprep.subr.mxu0 0.0
    %1764 = vmatpush1.msra.mxu0 0.0
    %1765 = vmatprep.subr.mxu0 0.0
    %1766 = vmatpush1.msra.mxu0 0.0
    %1767 = vmatprep.subr.mxu0 0.0
    %1768 = vmatpush1.msra.mxu0 0.0
    %1769 = vmatprep.subr.mxu0 0.0
    %1770 = vmatpush1.msra.mxu0 0.0
    %1771 = vmatprep.subr.mxu0 0.0
    %1772 = vmatpush1.msra.mxu0 0.0
    %1773 = vmatprep.subr.mxu0 0.0
    %1774 = vmatpush1.msra.mxu0 %v472
    %1775 = vmatprep.subr.mxu0 0.0
    %1776 = vmatpush1.msra.mxu0 %v471
    %1777 = vmatprep.subr.mxu0 0.0
    %1778 = vmatpush1.msra.mxu0 %v470
    %1779 = vmatprep.subr.mxu0 0.0
    %1780 = vmatpush1.msra.mxu0 %v469
    %1781 = vmatprep.subr.mxu0 0.0
    %1782 = vmatpush2.msra.mxu0 0.0
    %1783 = vmatprep.subr.mxu0 0.0
    %1784 = vmatpush2.msra.mxu0 0.0
    %1785 = vmatprep.subr.mxu0 0.0
    %1786 = vmatpush2.msra.mxu0 0.0
    %1787 = vmatprep.subr.mxu0 0.0
    %1788 = vmatpush2.msra.mxu0 0.0
    %1789 = vmatprep.subr.mxu0 0.0
    %1790 = vmatpush2.msra.mxu0 0.0
    %1791 = vmatprep.subr.mxu0 0.0
    %1792 = vmatpush2.msra.mxu0 0.0
    %1793 = vmatprep.subr.mxu0 0.0
    %1794 = vmatpush2.msra.mxu0 0.0
    %1795 = vmatprep.subr.mxu0 0.0
    %1796 = vmatpush2.msra.mxu0 0.0
    %1797 = vmatprep.subr.mxu0 0.0
    %1798 = vmatpush2.msra.mxu0 0.0
    %1799 = vmatprep.subr.mxu0 0.0
    %1800 = vmatpush2.msra.mxu0 0.0
    %1801 = vmatprep.subr.mxu0 0.0
    %1802 = vmatpush2.msra.mxu0 0.0
    %1803 = vmatprep.subr.mxu0 0.0
    %1804 = vmatpush2.msra.mxu0 0.0
    %1805 = vmatprep.subr.mxu0 0.0
    %1806 = vmatpush2.msra.mxu0 0.0
    %1807 = vmatprep.subr.mxu0 0.0
    %1808 = vmatpush2.msra.mxu0 0.0
    %1809 = vmatprep.subr.mxu0 0.0
    %1810 = vmatpush2.msra.mxu0 0.0
    %1811 = vmatprep.subr.mxu0 0.0
    %1812 = vmatpush2.msra.mxu0 0.0
    %1813 = vmatprep.mubr.f32.mxu0 0.0
    %1814 = vmatmul.mubr.f32.gmra.mxu0 %v1747
    %v1815 = vpop.f32.mrf.mxu0
    %v1816 = vadd.f32 0.0, %v1815
    %v1817 = vpop.f32.mrf.mxu0
    %1818 = vdwg.mxu0
    %v1819 = vadd.f32 %v461, %v1816
    %v1820 = vxor.u32 %v1819, 2147483648
    %v1821 = vmul.f32 %v1820, 1.442695
    %v1822 = vpow.pop %v1821
    %v1823 = vadd.f32 %v1822, 1.0
    %v1824 = vrcp.pop %v1823
    %v1825 = vmul.f32 1.0, %v1824
    %v1826 = vtanh.pop %v1819
    %v1827 = vmul.f32 %v1825, %v1630
    %1829 = vrot.lane.b32.xlu0 %v1826, 64
    %v1830 = vpop.permute.xlu0 %1829
    %v1832 = vmul.f32 %v1825, %v1830
    %1834 = vrot.lane.b32.xlu0 %v1832, 32
    %v1835 = vpop.permute.xlu0 %1834
    %v1837 = vadd.f32 %v1827, %v1835
    %v1838 = vtanh.pop %v1837
    %1840 = vrot.lane.b32.xlu0 %v1838, 64
    %v1841 = vpop.permute.xlu0 %1840
    %v1843 = vmul.f32 %v1825, %v1841
    %1845 = vrot.lane.b32.xlu0 %v1843, 32
    %v1846 = vpop.permute.xlu0 %1845
    %1848 = vrot.lane.b32.xlu0 %v1741, 64
    %v1849 = vpop.permute.xlu0 %1848
    %v1851 = vsel %vm339, %v1846, %v1849
    %v1853 = vsel %vm605, %v1851, 0
    %1855 = vmatprep.subr.mxu0 0.0
    %1856 = vmatpush1.msra.mxu0 0.0
    %1857 = vmatprep.subr.mxu0 0.0
    %1858 = vmatpush1.msra.mxu0 0.0
    %1859 = vmatprep.subr.mxu0 0.0
    %1860 = vmatpush1.msra.mxu0 0.0
    %1861 = vmatprep.subr.mxu0 0.0
    %1862 = vmatpush1.msra.mxu0 0.0
    %1863 = vmatprep.subr.mxu0 0.0
    %1864 = vmatpush1.msra.mxu0 0.0
    %1865 = vmatprep.subr.mxu0 0.0
    %1866 = vmatpush1.msra.mxu0 0.0
    %1867 = vmatprep.subr.mxu0 0.0
    %1868 = vmatpush1.msra.mxu0 0.0
    %1869 = vmatprep.subr.mxu0 0.0
    %1870 = vmatpush1.msra.mxu0 0.0
    %1871 = vmatprep.subr.mxu0 0.0
    %1872 = vmatpush1.msra.mxu0 %v480
    %1873 = vmatprep.subr.mxu0 0.0
    %1874 = vmatpush1.msra.mxu0 %v479
    %1875 = vmatprep.subr.mxu0 0.0
    %1876 = vmatpush1.msra.mxu0 %v478
    %1877 = vmatprep.subr.mxu0 0.0
    %1878 = vmatpush1.msra.mxu0 %v477
    %1879 = vmatprep.subr.mxu0 0.0
    %1880 = vmatpush1.msra.mxu0 %v476
    %1881 = vmatprep.subr.mxu0 0.0
    %1882 = vmatpush1.msra.mxu0 %v475
    %1883 = vmatprep.subr.mxu0 0.0
    %1884 = vmatpush1.msra.mxu0 %v474
    %1885 = vmatprep.subr.mxu0 0.0
    %1886 = vmatpush1.msra.mxu0 %v473
    %1887 = vmatprep.subr.mxu0 0.0
    %1888 = vmatpush2.msra.mxu0 0.0
    %1889 = vmatprep.subr.mxu0 0.0
    %1890 = vmatpush2.msra.mxu0 0.0
    %1891 = vmatprep.subr.mxu0 0.0
    %1892 = vmatpush2.msra.mxu0 0.0
    %1893 = vmatprep.subr.mxu0 0.0
    %1894 = vmatpush2.msra.mxu0 0.0
    %1895 = vmatprep.subr.mxu0 0.0
    %1896 = vmatpush2.msra.mxu0 0.0
    %1897 = vmatprep.subr.mxu0 0.0
    %1898 = vmatpush2.msra.mxu0 0.0
    %1899 = vmatprep.subr.mxu0 0.0
    %1900 = vmatpush2.msra.mxu0 0.0
    %1901 = vmatprep.subr.mxu0 0.0
    %1902 = vmatpush2.msra.mxu0 0.0
    %1903 = vmatprep.subr.mxu0 0.0
    %1904 = vmatpush2.msra.mxu0 0.0
    %1905 = vmatprep.subr.mxu0 0.0
    %1906 = vmatpush2.msra.mxu0 0.0
    %1907 = vmatprep.subr.mxu0 0.0
    %1908 = vmatpush2.msra.mxu0 0.0
    %1909 = vmatprep.subr.mxu0 0.0
    %1910 = vmatpush2.msra.mxu0 0.0
    %1911 = vmatprep.subr.mxu0 0.0
    %1912 = vmatpush2.msra.mxu0 0.0
    %1913 = vmatprep.subr.mxu0 0.0
    %1914 = vmatpush2.msra.mxu0 0.0
    %1915 = vmatprep.subr.mxu0 0.0
    %1916 = vmatpush2.msra.mxu0 0.0
    %1917 = vmatprep.subr.mxu0 0.0
    %1918 = vmatpush2.msra.mxu0 0.0
    %1919 = vmatprep.mubr.f32.mxu0 0.0
    %1920 = vmatmul.mubr.f32.gmra.mxu0 %v1853
    %v1921 = vpop.f32.mrf.mxu0
    %v1922 = vadd.f32 %v486, %v1921
    %v1923 = vpop.f32.mrf.mxu0
    %1924 = vdwg.mxu0
    %v1925 = vxor.u32 %v1922, 2147483648
    %v1926 = vmul.f32 %v1925, 1.442695
    %v1927 = vpow.pop %v1926
    %v1928 = vadd.f32 %v1927, 1.0
    %v1929 = vrcp.pop %v1928
    %v1930 = vmul.f32 1.0, %v1929
    %v1931 = vtanh.pop %v1922
    %v1932 = vmul.f32 %v1930, %v1735
    %1934 = vrot.lane.b32.xlu0 %v1931, 64
    %v1935 = vpop.permute.xlu0 %1934
    %v1937 = vmul.f32 %v1930, %v1935
    %1939 = vrot.lane.b32.xlu0 %v1937, 32
    %v1940 = vpop.permute.xlu0 %1939
    %v1942 = vadd.f32 %v1932, %v1940
    %v1943 = vtanh.pop %v1942
    %1945 = vrot.lane.b32.xlu0 %v1943, 64
    %v1946 = vpop.permute.xlu0 %1945
    %v1948 = vmul.f32 %v1930, %v1946
    %1950 = vrot.lane.b32.xlu0 %v1948, 32
    %v1951 = vpop.permute.xlu0 %1950
    %1953 = vst.msk [vmem:[#allocation2 + $0x30] sm:$0xff] %vm339, %v1951
    %v1954 = vsel %vm339, %v1846, 0
    %1956 = vmatprep.subr.mxu0 0.0
    %1957 = vmatpush1.msra.mxu0 0.0
    %1958 = vmatprep.subr.mxu0 0.0
    %1959 = vmatpush1.msra.mxu0 0.0
    %1960 = vmatprep.subr.mxu0 0.0
    %1961 = vmatpush1.msra.mxu0 0.0
    %1962 = vmatprep.subr.mxu0 0.0
    %1963 = vmatpush1.msra.mxu0 0.0
    %1964 = vmatprep.subr.mxu0 0.0
    %1965 = vmatpush1.msra.mxu0 0.0
    %1966 = vmatprep.subr.mxu0 0.0
    %1967 = vmatpush1.msra.mxu0 0.0
    %1968 = vmatprep.subr.mxu0 0.0
    %1969 = vmatpush1.msra.mxu0 0.0
    %1970 = vmatprep.subr.mxu0 0.0
    %1971 = vmatpush1.msra.mxu0 0.0
    %1972 = vmatprep.subr.mxu0 0.0
    %1973 = vmatpush1.msra.mxu0 0.0
    %1974 = vmatprep.subr.mxu0 0.0
    %1975 = vmatpush1.msra.mxu0 0.0
    %1976 = vmatprep.subr.mxu0 0.0
    %1977 = vmatpush1.msra.mxu0 0.0
    %1978 = vmatprep.subr.mxu0 0.0
    %1979 = vmatpush1.msra.mxu0 0.0
    %1980 = vmatprep.subr.mxu0 0.0
    %1981 = vmatpush1.msra.mxu0 %v472
    %1982 = vmatprep.subr.mxu0 0.0
    %1983 = vmatpush1.msra.mxu0 %v471
    %1984 = vmatprep.subr.mxu0 0.0
    %1985 = vmatpush1.msra.mxu0 %v470
    %1986 = vmatprep.subr.mxu0 0.0
    %1987 = vmatpush1.msra.mxu0 %v469
    %1988 = vmatprep.subr.mxu0 0.0
    %1989 = vmatpush2.msra.mxu0 0.0
    %1990 = vmatprep.subr.mxu0 0.0
    %1991 = vmatpush2.msra.mxu0 0.0
    %1992 = vmatprep.subr.mxu0 0.0
    %1993 = vmatpush2.msra.mxu0 0.0
    %1994 = vmatprep.subr.mxu0 0.0
    %1995 = vmatpush2.msra.mxu0 0.0
    %1996 = vmatprep.subr.mxu0 0.0
    %1997 = vmatpush2.msra.mxu0 0.0
    %1998 = vmatprep.subr.mxu0 0.0
    %1999 = vmatpush2.msra.mxu0 0.0
    %2000 = vmatprep.subr.mxu0 0.0
    %2001 = vmatpush2.msra.mxu0 0.0
    %2002 = vmatprep.subr.mxu0 0.0
    %2003 = vmatpush2.msra.mxu0 0.0
    %2004 = vmatprep.subr.mxu0 0.0
    %2005 = vmatpush2.msra.mxu0 0.0
    %2006 = vmatprep.subr.mxu0 0.0
    %2007 = vmatpush2.msra.mxu0 0.0
    %2008 = vmatprep.subr.mxu0 0.0
    %2009 = vmatpush2.msra.mxu0 0.0
    %2010 = vmatprep.subr.mxu0 0.0
    %2011 = vmatpush2.msra.mxu0 0.0
    %2012 = vmatprep.subr.mxu0 0.0
    %2013 = vmatpush2.msra.mxu0 0.0
    %2014 = vmatprep.subr.mxu0 0.0
    %2015 = vmatpush2.msra.mxu0 0.0
    %2016 = vmatprep.subr.mxu0 0.0
    %2017 = vmatpush2.msra.mxu0 0.0
    %2018 = vmatprep.subr.mxu0 0.0
    %2019 = vmatpush2.msra.mxu0 0.0
    %2020 = vmatprep.mubr.f32.mxu0 0.0
    %2021 = vmatmul.mubr.f32.gmra.mxu0 %v1954
    %v2022 = vpop.f32.mrf.mxu0
    %v2023 = vadd.f32 0.0, %v2022
    %v2024 = vpop.f32.mrf.mxu0
    %2025 = vdwg.mxu0
    %v2026 = vadd.f32 %v466, %v2023
    %v2027 = vxor.u32 %v2026, 2147483648
    %v2028 = vmul.f32 %v2027, 1.442695
    %v2029 = vpow.pop %v2028
    %v2030 = vadd.f32 %v2029, 1.0
    %v2031 = vrcp.pop %v2030
    %v2032 = vmul.f32 1.0, %v2031
    %v2033 = vtanh.pop %v2026
    %v2034 = vmul.f32 %v2032, %v1837
    %2036 = vrot.lane.b32.xlu0 %v2033, 64
    %v2037 = vpop.permute.xlu0 %2036
    %v2039 = vmul.f32 %v2032, %v2037
    %2041 = vrot.lane.b32.xlu0 %v2039, 32
    %v2042 = vpop.permute.xlu0 %2041
    %v2044 = vadd.f32 %v2034, %v2042
    %v2045 = vtanh.pop %v2044
    %2047 = vrot.lane.b32.xlu0 %v2045, 64
    %v2048 = vpop.permute.xlu0 %2047
    %v2050 = vmul.f32 %v2032, %v2048
    %2052 = vrot.lane.b32.xlu0 %v2050, 32
    %v2053 = vpop.permute.xlu0 %2052
    %2055 = vrot.lane.b32.xlu0 %v1948, 64
    %v2056 = vpop.permute.xlu0 %2055
    %v2058 = vsel %vm339, %v2053, %v2056
    %v2060 = vsel %vm605, %v2058, 0
    %2062 = vmatprep.subr.mxu0 0.0
    %2063 = vmatpush1.msra.mxu0 0.0
    %2064 = vmatprep.subr.mxu0 0.0
    %2065 = vmatpush1.msra.mxu0 0.0
    %2066 = vmatprep.subr.mxu0 0.0
    %2067 = vmatpush1.msra.mxu0 0.0
    %2068 = vmatprep.subr.mxu0 0.0
    %2069 = vmatpush1.msra.mxu0 0.0
    %2070 = vmatprep.subr.mxu0 0.0
    %2071 = vmatpush1.msra.mxu0 0.0
    %2072 = vmatprep.subr.mxu0 0.0
    %2073 = vmatpush1.msra.mxu0 0.0
    %2074 = vmatprep.subr.mxu0 0.0
    %2075 = vmatpush1.msra.mxu0 0.0
    %2076 = vmatprep.subr.mxu0 0.0
    %2077 = vmatpush1.msra.mxu0 0.0
    %2078 = vmatprep.subr.mxu0 0.0
    %2079 = vmatpush1.msra.mxu0 %v480
    %2080 = vmatprep.subr.mxu0 0.0
    %2081 = vmatpush1.msra.mxu0 %v479
    %2082 = vmatprep.subr.mxu0 0.0
    %2083 = vmatpush1.msra.mxu0 %v478
    %2084 = vmatprep.subr.mxu0 0.0
    %2085 = vmatpush1.msra.mxu0 %v477
    %2086 = vmatprep.subr.mxu0 0.0
    %2087 = vmatpush1.msra.mxu0 %v476
    %2088 = vmatprep.subr.mxu0 0.0
    %2089 = vmatpush1.msra.mxu0 %v475
    %2090 = vmatprep.subr.mxu0 0.0
    %2091 = vmatpush1.msra.mxu0 %v474
    %2092 = vmatprep.subr.mxu0 0.0
    %2093 = vmatpush1.msra.mxu0 %v473
    %2094 = vmatprep.subr.mxu0 0.0
    %2095 = vmatpush2.msra.mxu0 0.0
    %2096 = vmatprep.subr.mxu0 0.0
    %2097 = vmatpush2.msra.mxu0 0.0
    %2098 = vmatprep.subr.mxu0 0.0
    %2099 = vmatpush2.msra.mxu0 0.0
    %2100 = vmatprep.subr.mxu0 0.0
    %2101 = vmatpush2.msra.mxu0 0.0
    %2102 = vmatprep.subr.mxu0 0.0
    %2103 = vmatpush2.msra.mxu0 0.0
    %2104 = vmatprep.subr.mxu0 0.0
    %2105 = vmatpush2.msra.mxu0 0.0
    %2106 = vmatprep.subr.mxu0 0.0
    %2107 = vmatpush2.msra.mxu0 0.0
    %2108 = vmatprep.subr.mxu0 0.0
    %2109 = vmatpush2.msra.mxu0 0.0
    %2110 = vmatprep.subr.mxu0 0.0
    %2111 = vmatpush2.msra.mxu0 0.0
    %2112 = vmatprep.subr.mxu0 0.0
    %2113 = vmatpush2.msra.mxu0 0.0
    %2114 = vmatprep.subr.mxu0 0.0
    %2115 = vmatpush2.msra.mxu0 0.0
    %2116 = vmatprep.subr.mxu0 0.0
    %2117 = vmatpush2.msra.mxu0 0.0
    %2118 = vmatprep.subr.mxu0 0.0
    %2119 = vmatpush2.msra.mxu0 0.0
    %2120 = vmatprep.subr.mxu0 0.0
    %2121 = vmatpush2.msra.mxu0 0.0
    %2122 = vmatprep.subr.mxu0 0.0
    %2123 = vmatpush2.msra.mxu0 0.0
    %2124 = vmatprep.subr.mxu0 0.0
    %2125 = vmatpush2.msra.mxu0 0.0
    %2126 = vmatprep.mubr.f32.mxu0 0.0
    %2127 = vmatmul.mubr.f32.gmra.mxu0 %v2060
    %v2128 = vpop.f32.mrf.mxu0
    %v2129 = vadd.f32 %v486, %v2128
    %v2130 = vpop.f32.mrf.mxu0
    %2131 = vdwg.mxu0
    %v2132 = vxor.u32 %v2129, 2147483648
    %v2133 = vmul.f32 %v2132, 1.442695
    %v2134 = vpow.pop %v2133
    %v2135 = vadd.f32 %v2134, 1.0
    %v2136 = vrcp.pop %v2135
    %v2137 = vmul.f32 1.0, %v2136
    %v2138 = vtanh.pop %v2129
    %v2139 = vmul.f32 %v2137, %v1942
    %2141 = vrot.lane.b32.xlu0 %v2138, 64
    %v2142 = vpop.permute.xlu0 %2141
    %v2144 = vmul.f32 %v2137, %v2142
    %2146 = vrot.lane.b32.xlu0 %v2144, 32
    %v2147 = vpop.permute.xlu0 %2146
    %v2149 = vadd.f32 %v2139, %v2147
    %v2150 = vtanh.pop %v2149
    %2152 = vrot.lane.b32.xlu0 %v2150, 64
    %v2153 = vpop.permute.xlu0 %2152
    %v2155 = vmul.f32 %v2137, %v2153
    %2157 = vrot.lane.b32.xlu0 %v2155, 32
    %v2158 = vpop.permute.xlu0 %2157
    %2160 = vst.msk [vmem:[#allocation2 + $0x38] sm:$0xff] %vm339, %v2158
    %v2161 = vld [vmem:[#allocation2] sm:$0xff]
    %v2162 = vld [vmem:[#allocation2 + $0x8] sm:$0xff]
    %v2163 = vld [vmem:[#allocation2 + $0x10] sm:$0xff]
    %v2164 = vld [vmem:[#allocation2 + $0x18] sm:$0xff]
    %v2165 = vld [vmem:[#allocation2 + $0x20] sm:$0xff]
    %v2166 = vld [vmem:[#allocation2 + $0x28] sm:$0xff]
    %v2167 = vld [vmem:[#allocation2 + $0x30] sm:$0xff]
    %v2168 = vld [vmem:[#allocation2 + $0x38] sm:$0xff]
    %2177 = vrot.lane.b32.xlu0 %v2161, 32
    %v2178 = vpop.permute.xlu0 %2177
    %2179 = vrot.lane.b32.xlu0 %v2162, 32
    %v2180 = vpop.permute.xlu0 %2179
    %2181 = vrot.lane.b32.xlu0 %v2163, 32
    %v2182 = vpop.permute.xlu0 %2181
    %2183 = vrot.lane.b32.xlu0 %v2164, 32
    %v2184 = vpop.permute.xlu0 %2183
    %2185 = vrot.lane.b32.xlu0 %v2165, 32
    %v2186 = vpop.permute.xlu0 %2185
    %2187 = vrot.lane.b32.xlu0 %v2166, 32
    %v2188 = vpop.permute.xlu0 %2187
    %2189 = vrot.lane.b32.xlu0 %v2167, 32
    %v2190 = vpop.permute.xlu0 %2189
    %2191 = vrot.lane.b32.xlu0 %v2168, 32
    %v2192 = vpop.permute.xlu0 %2191
    %v2201 = vadd.f32 %v320, %v2178
    %v2202 = vadd.f32 %v321, %v2180
    %v2203 = vadd.f32 %v322, %v2182
    %v2204 = vadd.f32 %v323, %v2184
    %v2205 = vadd.f32 %v324, %v2186
    %v2206 = vadd.f32 %v325, %v2188
    %v2207 = vadd.f32 %v326, %v2190
    %v2208 = vadd.f32 %v327, %v2192
    %v2209 = vld [vmem:[%s10] sm:$0xff]
    %v2210 = vld [vmem:[%s10 + $0x8] sm:$0xff]
    %v2211 = vld [vmem:[%s10 + $0x10] sm:$0xff]
    %v2212 = vld [vmem:[%s10 + $0x18] sm:$0xff]
    %v2213 = vld [vmem:[%s11] sm:$0x1]
    %v2215 = vlaneseq
    %v2216 = vshrl.u32 %v2215, 7
    %v2217 = vsub.s32 0, %v2216
    %v2218 = vrot.slane %v2213, %v2217
    %2228 = vrot.lane.b32.xlu0 %v2201, 96
    %v2229 = vpop.permute.xlu0 %2228
    %2230 = vrot.lane.b32.xlu0 %v2202, 96
    %v2231 = vpop.permute.xlu0 %2230
    %2232 = vrot.lane.b32.xlu0 %v2203, 96
    %v2233 = vpop.permute.xlu0 %2232
    %2234 = vrot.lane.b32.xlu0 %v2204, 96
    %v2235 = vpop.permute.xlu0 %2234
    %2236 = vrot.lane.b32.xlu0 %v2205, 96
    %v2237 = vpop.permute.xlu0 %2236
    %2238 = vrot.lane.b32.xlu0 %v2206, 96
    %v2239 = vpop.permute.xlu0 %2238
    %2240 = vrot.lane.b32.xlu0 %v2207, 96
    %v2241 = vpop.permute.xlu0 %2240
    %2242 = vrot.lane.b32.xlu0 %v2208, 96
    %v2243 = vpop.permute.xlu0 %2242
    %v2244 = vsel %vm339, %v2229, 0
    %v2246 = vsel %vm339, %v2231, 0
    %v2248 = vsel %vm339, %v2233, 0
    %v2250 = vsel %vm339, %v2235, 0
    %v2252 = vsel %vm339, %v2237, 0
    %v2254 = vsel %vm339, %v2239, 0
    %v2256 = vsel %vm339, %v2241, 0
    %v2258 = vsel %vm339, %v2243, 0
    %2260 = vmatprep.subr.mxu0 0.0
    %2261 = vmatpush1.msra.mxu0 0.0
    %2262 = vmatprep.subr.mxu0 0.0
    %2263 = vmatpush1.msra.mxu0 0.0
    %2264 = vmatprep.subr.mxu0 0.0
    %2265 = vmatpush1.msra.mxu0 0.0
    %2266 = vmatprep.subr.mxu0 0.0
    %2267 = vmatpush1.msra.mxu0 0.0
    %2268 = vmatprep.subr.mxu0 0.0
    %2269 = vmatpush1.msra.mxu0 0.0
    %2270 = vmatprep.subr.mxu0 0.0
    %2271 = vmatpush1.msra.mxu0 0.0
    %2272 = vmatprep.subr.mxu0 0.0
    %2273 = vmatpush1.msra.mxu0 0.0
    %2274 = vmatprep.subr.mxu0 0.0
    %2275 = vmatpush1.msra.mxu0 0.0
    %2276 = vmatprep.subr.mxu0 0.0
    %2277 = vmatpush1.msra.mxu0 0.0
    %2278 = vmatprep.subr.mxu0 0.0
    %2279 = vmatpush1.msra.mxu0 0.0
    %2280 = vmatprep.subr.mxu0 0.0
    %2281 = vmatpush1.msra.mxu0 0.0
    %2282 = vmatprep.subr.mxu0 0.0
    %2283 = vmatpush1.msra.mxu0 0.0
    %2284 = vmatprep.subr.mxu0 0.0
    %2285 = vmatpush1.msra.mxu0 %v2212
    %2286 = vmatprep.subr.mxu0 0.0
    %2287 = vmatpush1.msra.mxu0 %v2211
    %2288 = vmatprep.subr.mxu0 0.0
    %2289 = vmatpush1.msra.mxu0 %v2210
    %2290 = vmatprep.subr.mxu0 0.0
    %2291 = vmatpush1.msra.mxu0 %v2209
    %2292 = vmatprep.subr.mxu0 0.0
    %2293 = vmatpush2.msra.mxu0 0.0
    %2294 = vmatprep.subr.mxu0 0.0
    %2295 = vmatpush2.msra.mxu0 0.0
    %2296 = vmatprep.subr.mxu0 0.0
    %2297 = vmatpush2.msra.mxu0 0.0
    %2298 = vmatprep.subr.mxu0 0.0
    %2299 = vmatpush2.msra.mxu0 0.0
    %2300 = vmatprep.subr.mxu0 0.0
    %2301 = vmatpush2.msra.mxu0 0.0
    %2302 = vmatprep.subr.mxu0 0.0
    %2303 = vmatpush2.msra.mxu0 0.0
    %2304 = vmatprep.subr.mxu0 0.0
    %2305 = vmatpush2.msra.mxu0 0.0
    %2306 = vmatprep.subr.mxu0 0.0
    %2307 = vmatpush2.msra.mxu0 0.0
    %2308 = vmatprep.subr.mxu0 0.0
    %2309 = vmatpush2.msra.mxu0 0.0
    %2310 = vmatprep.subr.mxu0 0.0
    %2311 = vmatpush2.msra.mxu0 0.0
    %2312 = vmatprep.subr.mxu0 0.0
    %2313 = vmatpush2.msra.mxu0 0.0
    %2314 = vmatprep.subr.mxu0 0.0
    %2315 = vmatpush2.msra.mxu0 0.0
    %2316 = vmatprep.subr.mxu0 0.0
    %2317 = vmatpush2.msra.mxu0 0.0
    %2318 = vmatprep.subr.mxu0 0.0
    %2319 = vmatpush2.msra.mxu0 0.0
    %2320 = vmatprep.subr.mxu0 0.0
    %2321 = vmatpush2.msra.mxu0 0.0
    %2322 = vmatprep.subr.mxu0 0.0
    %2323 = vmatpush2.msra.mxu0 0.0
    %2324 = vmatprep.mubr.f32.mxu0 0.0
    %2325 = vmatmul.mubr.f32.gmra.mxu0 %v2244
    %v2326 = vpop.f32.mrf.mxu0
    %v2327 = vadd.f32 %v2218, %v2326
    %v2328 = vpop.f32.mrf.mxu0
    %2329 = vmatprep.mubr.f32.mxu0 0.0
    %2330 = vmatmul.mubr.f32.gmra.mxu0 %v2246
    %v2331 = vpop.f32.mrf.mxu0
    %v2332 = vadd.f32 %v2218, %v2331
    %v2333 = vpop.f32.mrf.mxu0
    %2334 = vmatprep.mubr.f32.mxu0 0.0
    %2335 = vmatmul.mubr.f32.gmra.mxu0 %v2248
    %v2336 = vpop.f32.mrf.mxu0
    %v2337 = vadd.f32 %v2218, %v2336
    %v2338 = vpop.f32.mrf.mxu0
    %2339 = vmatprep.mubr.f32.mxu0 0.0
    %2340 = vmatmul.mubr.f32.gmra.mxu0 %v2250
    %v2341 = vpop.f32.mrf.mxu0
    %v2342 = vadd.f32 %v2218, %v2341
    %v2343 = vpop.f32.mrf.mxu0
    %2344 = vmatprep.mubr.f32.mxu0 0.0
    %2345 = vmatmul.mubr.f32.gmra.mxu0 %v2252
    %v2346 = vpop.f32.mrf.mxu0
    %v2347 = vadd.f32 %v2218, %v2346
    %v2348 = vpop.f32.mrf.mxu0
    %2349 = vmatprep.mubr.f32.mxu0 0.0
    %2350 = vmatmul.mubr.f32.gmra.mxu0 %v2254
    %v2351 = vpop.f32.mrf.mxu0
    %v2352 = vadd.f32 %v2218, %v2351
    %v2353 = vpop.f32.mrf.mxu0
    %2354 = vmatprep.mubr.f32.mxu0 0.0
    %2355 = vmatmul.mubr.f32.gmra.mxu0 %v2256
    %v2356 = vpop.f32.mrf.mxu0
    %v2357 = vadd.f32 %v2218, %v2356
    %v2358 = vpop.f32.mrf.mxu0
    %2359 = vmatprep.mubr.f32.mxu0 0.0
    %2360 = vmatmul.mubr.f32.gmra.mxu0 %v2258
    %v2361 = vpop.f32.mrf.mxu0
    %v2362 = vadd.f32 %v2218, %v2361
    %v2363 = vpop.f32.mrf.mxu0
    %2364 = vdwg.mxu0
    %v2365 = vtanh.pop %v2327
    %v2366 = vtanh.pop %v2332
    %v2367 = vtanh.pop %v2337
    %v2368 = vtanh.pop %v2342
    %v2369 = vtanh.pop %v2347
    %v2370 = vtanh.pop %v2352
    %v2371 = vtanh.pop %v2357
    %v2372 = vtanh.pop %v2362
    %2373 = vst.msk [vmem:[%s12] sm:$0xff] %vm339, %v2365
    %2374 = vst.msk [vmem:[%s12 + $0x8] sm:$0xff] %vm339, %v2366
    %2375 = vst.msk [vmem:[%s12 + $0x10] sm:$0xff] %vm339, %v2367
    %2376 = vst.msk [vmem:[%s12 + $0x18] sm:$0xff] %vm339, %v2368
    %2377 = vst.msk [vmem:[%s12 + $0x20] sm:$0xff] %vm339, %v2369
    %2378 = vst.msk [vmem:[%s12 + $0x28] sm:$0xff] %vm339, %v2370
    %2379 = vst.msk [vmem:[%s12 + $0x30] sm:$0xff] %vm339, %v2371
    %2380 = vst.msk [vmem:[%s12 + $0x38] sm:$0xff] %vm339, %v2372
    %2381 = vst.msk [vmem:[#allocation17] sm:$0xff] %vm339, %v2053
    %s2382 = scalar_lea.vmem [#allocation17], 8
    %2383 = vst.msk [vmem:[%s2382] sm:$0xff] %vm339, %v2158
    %2385 = vrot.lane.b32.xlu0 %v2044, 96
    %v2386 = vpop.permute.xlu0 %2385
    %2388 = vst.msk [vmem:[#allocation18] sm:$0xff] %vm339, %v2386
    %2390 = vrot.lane.b32.xlu0 %v2149, 96
    %v2391 = vpop.permute.xlu0 %2390
    %s2393 = scalar_lea.vmem [#allocation18], 8
    %2394 = vst.msk [vmem:[%s2393] sm:$0xff] %vm339, %v2391
    // Predicated region
    $region82: #{tpu_custom_call.1} parent=1 // pred_check
      _
    $region83: #{tpu_custom_call.1} parent=1 // pred_check_branch
      %2396 = sbr.rel (0) target = $region85
    $region84: #{tpu_custom_call.1} parent=1 // pred_region
      _
    $region85: #{tpu_custom_call.1} parent=1 // pred_fallthru
      _
    // Predicated region
    $region86: #{tpu_custom_call.1} parent=1 // pred_check
      _
    $region87: #{tpu_custom_call.1} parent=1 // pred_check_branch
      %2398 = sbr.rel (0) target = $region89
    $region88: #{tpu_custom_call.1} parent=1 // pred_region
      %s2400 = ssub.s32 256, 256
      %2401 = vsyncadd [#allocation5], %s2400
      %s2402 = sshll.u32 [#allocation17], 4
      %s2403 = int_to_ptr.vmem [resolvable:$true] %s2402
      %2408 = dma.vmem_to_hbm [thread:$0]  %s2403, 256, %s13, [#allocation5], 128, 128, 8
    $region89: #{tpu_custom_call.1} parent=1 // pred_fallthru
      _
    // Predicated region
    $region90: #{tpu_custom_call.1} parent=1 // pred_check
      _
    $region91: #{tpu_custom_call.1} parent=1 // pred_check_branch
      %2410 = sbr.rel (0) target = $region93
    $region92: #{tpu_custom_call.1} parent=1 // pred_region
      %s2412 = ssub.s32 256, 256
      %2413 = vsyncadd [#allocation19], %s2412
      %s2414 = sshll.u32 [#allocation18], 4
      %s2415 = int_to_ptr.vmem [resolvable:$true] %s2414
      %2420 = dma.vmem_to_hbm [thread:$0]  %s2415, 256, %s14, [#allocation19], 128, 128, 8
    $region93: #{tpu_custom_call.1} parent=1 // pred_fallthru
      _
    // Predicated region
    $region94: #{tpu_custom_call.1} parent=1 // pred_check
      _
    $region95: #{tpu_custom_call.1} parent=1 // pred_check_branch
      %2422 = sbr.rel (0) target = $region97
    $region96: #{tpu_custom_call.1} parent=1 // pred_region
      _
    $region97: #{tpu_custom_call.1} parent=1 // pred_fallthru
      _
    // Predicated region
    $region98: #{tpu_custom_call.1} parent=1 // pred_check
      _
    $region99: #{tpu_custom_call.1} parent=1 // pred_check_branch
      %2424 = sbr.rel (0) target = $region101
    $region100: #{tpu_custom_call.1} parent=1 // pred_region
      %2425 = dma.done [#allocation5], 256
    $region101: #{tpu_custom_call.1} parent=1 // pred_fallthru
      _
    // Predicated region
    $region102: #{tpu_custom_call.1} parent=1 // pred_check
      _
    $region103: #{tpu_custom_call.1} parent=1 // pred_check_branch
      %2427 = sbr.rel (0) target = $region105
    $region104: #{tpu_custom_call.1} parent=1 // pred_region
      %2428 = dma.done [#allocation19], 256
    $region105: #{tpu_custom_call.1} parent=1 // pred_fallthru
      _
    %2429 = vsyncpa [#allocation4], 1
    %2430 = vsyncpa [#allocation7], 1
    %2431 = vsyncpa [#allocation10], 1
    %2432 = vsyncpa [#allocation13], 1
    %2433 = vsyncpa [#allocation16], 1
    %2434 = vsyncpa [#allocation5], 1
    %2435 = vsyncpa [#allocation19], 1

</llo_original>
